<compile_context>
chip_gen: v5e
topology: v5e:2x2
jax: 0.10.0
libtpu: 0.0.40
codegen_flags: <defaults>
</compile_context>

<pallas_src>
import jax
import jax.numpy as jnp
from jax import lax
from jax.experimental import pallas as pl
from jax.experimental.pallas import tpu as pltpu

D = 768          # fixed by nn.Linear(768, 768)
EPS = 1e-12      # F.normalize default eps


def _cdiv(a, b):
    return (a + b - 1) // b


def _round_up(n, m):
    return _cdiv(n, m) * m


def item_model_kernel(x_ref, wt_ref, b_ref, o_ref):
    # x_ref : (tm, D)  input tile, f32
    # wt_ref: (D, D)   pre-transposed weight W^T (in_features, out_features), bf16
    # b_ref : (1, D)   bias, f32
    # o_ref : (tm, D)  output tile
    x = x_ref[...]                                   # f32, kept for the residual

    # Linear: y = x @ W^T + b. bf16 operands on the MXU, f32 accumulation.
    # wt_ref already holds W^T, so this is a plain [M,K]x[K,N] contraction.
    y = jnp.dot(x.astype(jnp.bfloat16), wt_ref[...],
                preferred_element_type=jnp.float32)

    # bias + residual (x += item_embeddings), all in f32
    y = y + b_ref[...] + x

    # F.normalize(y, p=2, dim=1): row / max(||row||_2, eps)
    # == row * rsqrt(max(sum(row^2), eps^2))  (sqrt is monotonic)
    sq_sum = jnp.sum(y * y, axis=-1, keepdims=True)          # (tm, 1)
    inv = lax.rsqrt(jnp.maximum(sq_sum, EPS * EPS))          # EUP rsqrt
    o_ref[...] = (y * inv).astype(o_ref.dtype)


def item_model_forward(x, weight, bias, *, tm=1024):
    """x: (N, 768) f32; weight: (768, 768) torch layout (out, in); bias: (768,)."""
    N, d = x.shape
    assert d == D and weight.shape == (D, D) and bias.shape == (D,)

    # Effective row tile: multiple of 8 (sublane), capped by tm, and chosen so
    # the grid keeps >=2 steps when possible (megacore sharding on v7x).
    tm_eff = max(8, min(tm, _round_up(_cdiv(N, 2), 8)))
    grid = _cdiv(N, tm_eff)            # partial last tile is masked by Pallas

    w_t = weight.T.astype(jnp.bfloat16)       # one-time XLA transpose + cast
    b2 = bias.reshape(1, D).astype(jnp.float32)

    out = pl.pallas_call(
        item_model_kernel,
        out_shape=jax.ShapeDtypeStruct((N, D), x.dtype),
        grid_spec=pltpu.PrefetchScalarGridSpec(
            num_scalar_prefetch=0,
            grid=(grid,),
            in_specs=[
                pl.BlockSpec((tm_eff, D), lambda i: (i, 0)),   # x tile
                pl.BlockSpec((D, D), lambda i: (0, 0)),        # W^T (resident)
                pl.BlockSpec((1, D), lambda i: (0, 0)),        # bias
            ],
            out_specs=pl.BlockSpec((tm_eff, D), lambda i: (i, 0)),
        ),
        compiler_params=pltpu.CompilerParams(
            dimension_semantics=("parallel",),
            vmem_limit_bytes=48 * 1024 * 1024,
        ),
    )(x, w_t, b2)

    return out


def _reference(x, weight, bias):
    y = x @ weight.T + bias + x
    norm = jnp.sqrt(jnp.sum(y * y, axis=1, keepdims=True))
    return y / jnp.maximum(norm, EPS)


if __name__ == "__main__":
    key = jax.random.PRNGKey(0)
    k_x, k_w, k_b = jax.random.split(key, 3)

    N = 12                                   # small batch; exercises the
    x = jax.random.normal(k_x, (N, D), dtype=jnp.float32)   # partial-tile path

    # --- Test 1: parameters exactly as ItemModel._initialize_weights ---------
    # nn.init.eye_(weight), bias = 0.
    w_eye = jnp.eye(D, dtype=jnp.float32)    # torch layout (out_features, in_features)
    b_zero = jnp.zeros((D,), dtype=jnp.float32)

    out1 = jax.block_until_ready(item_model_forward(x, w_eye, b_zero))
    ref1 = _reference(x, w_eye, b_zero)
    assert out1.shape == (N, D)
    assert jnp.allclose(out1, ref1, atol=1e-2, rtol=1e-2)

    # --- Test 2: non-symmetric random weight (catches any transpose bug) -----
    w_rand = jnp.eye(D, dtype=jnp.float32) + \
        0.02 * jax.random.normal(k_w, (D, D), dtype=jnp.float32)
    b_rand = 0.1 * jax.random.normal(k_b, (D,), dtype=jnp.float32)

    out2 = jax.block_until_ready(item_model_forward(x, w_rand, b_rand))
    ref2 = _reference(x, w_rand, b_rand)
    # bf16 MXU operands (f32 accumulate) -> loosened tolerance vs f32 reference.
    assert out2.shape == (N, D)
    assert jnp.allclose(out2, ref2, atol=1e-2, rtol=1e-2)

    print("KERNEL_OK")
</pallas_src>

<mosaic_0001>
module attributes {stable_mosaic.version = 11 : i64} {
  func.func @item_model_kernel(%arg0: i32, %arg1: memref<8x768xf32, #tpu.memory_space<vmem>>, %arg2: memref<768x768xbf16, #tpu.memory_space<vmem>>, %arg3: memref<1x768xf32, #tpu.memory_space<vmem>>, %arg4: memref<8x768xf32, #tpu.memory_space<vmem>>) attributes {dimension_semantics = [#tpu.dimension_semantics<parallel>], iteration_bounds = array<i64: 2>, scalar_prefetch = 0 : i64, scratch_operands = 0 : i64, tpu.core_type = #tpu.core_type<tc>, window_params = [{transform_indices = @transform_0, window_bounds = array<i64: 8, 768>}, {pipeline_mode = #tpu.pipeline_mode<synchronous>, transform_indices = @transform_1, window_bounds = array<i64: 768, 768>}, {pipeline_mode = #tpu.pipeline_mode<synchronous>, transform_indices = @transform_2, window_bounds = array<i64: 1, 768>}, {transform_indices = @transform_3, window_bounds = array<i64: 8, 768>}]} {
    %c0 = arith.constant 0 : index
    %c0_0 = arith.constant 0 : index
    %0 = vector.load %arg1[%c0, %c0_0] : memref<8x768xf32, #tpu.memory_space<vmem>>, vector<8x768xf32>
    %1 = arith.truncf %0 : vector<8x768xf32> to vector<8x768xbf16>
    %c0_1 = arith.constant 0 : index
    %c0_2 = arith.constant 0 : index
    %2 = vector.load %arg2[%c0_1, %c0_2] : memref<768x768xbf16, #tpu.memory_space<vmem>>, vector<768x768xbf16>
    %cst = arith.constant dense<0.000000e+00> : vector<8x768xf32>
    %3 = tpu.matmul %1, %2, %cst {dimension_numbers = #tpu.dot_dimension_numbers<[1], [0], [0], [1], [0, 0, 1, 1], [], []>} : vector<8x768xbf16>, vector<768x768xbf16>, vector<8x768xf32> -> vector<8x768xf32>
    %c0_3 = arith.constant 0 : index
    %c0_4 = arith.constant 0 : index
    %4 = vector.load %arg3[%c0_3, %c0_4] : memref<1x768xf32, #tpu.memory_space<vmem>>, vector<1x768xf32>
    %5 = vector.broadcast %4 : vector<1x768xf32> to vector<8x768xf32>
    %6 = arith.addf %3, %5 : vector<8x768xf32>
    %7 = arith.addf %6, %0 : vector<8x768xf32>
    %8 = arith.mulf %7, %7 : vector<8x768xf32>
    %cst_5 = arith.constant dense<0.000000e+00> : vector<8xf32>
    %9 = vector.multi_reduction <add>, %8, %cst_5 [1] : vector<8x768xf32> to vector<8xf32>
    %10 = vector.shape_cast %9 : vector<8xf32> to vector<8x1xf32>
    %cst_6 = arith.constant 1.000000e-24 : f32
    %11 = vector.broadcast %cst_6 : f32 to vector<8x1xf32>
    %12 = arith.maximumf %10, %11 : vector<8x1xf32>
    %13 = math.rsqrt %12 : vector<8x1xf32>
    %14 = vector.broadcast %13 : vector<8x1xf32> to vector<8x768xf32>
    %15 = arith.mulf %7, %14 : vector<8x768xf32>
    %c0_7 = arith.constant 0 : index
    %c0_8 = arith.constant 0 : index
    %16 = vector.load %arg4[%c0_7, %c0_8] : memref<8x768xf32, #tpu.memory_space<vmem>>, vector<8x768xf32>
    tpu.vector_store %arg4[%c0_7, %c0_8], %15 {strides = array<i32>} : memref<8x768xf32, #tpu.memory_space<vmem>>, vector<8x768xf32>,
    return
  }
  func.func @transform_0(%arg0: i32) -> (i32, i32) {
    %c0_i32 = arith.constant 0 : i32
    %c0_i32_0 = arith.constant 0 : i32
    return %arg0, %c0_i32 : i32, i32
  }
  func.func @transform_1(%arg0: i32) -> (i32, i32) {
    %c0_i32 = arith.constant 0 : i32
    %c0_i32_0 = arith.constant 0 : i32
    %c0_i32_1 = arith.constant 0 : i32
    return %c0_i32, %c0_i32_0 : i32, i32
  }
  func.func @transform_2(%arg0: i32) -> (i32, i32) {
    %c0_i32 = arith.constant 0 : i32
    %c0_i32_0 = arith.constant 0 : i32
    %c0_i32_1 = arith.constant 0 : i32
    return %c0_i32, %c0_i32_0 : i32, i32
  }
  func.func @transform_3(%arg0: i32) -> (i32, i32) {
    %c0_i32 = arith.constant 0 : i32
    %c0_i32_0 = arith.constant 0 : i32
    return %arg0, %c0_i32 : i32, i32
  }
}

</mosaic_0001>

<llo_original>
// kernel: tpu_custom_call.1
$region0: #{tpu_custom_call.1}
  #allocation0 [shape = 'u32[]', space=smem, size = 0x4, offset = 0x4, fixed_abs, tag = 'smem constant byte address 0x4 - core index']
  #allocation1 [shape = 'u32[72,128]{1,0:T(1,128)}', space=vmem, size = 0x9000, scoped, tag = 'internal scratch']
  %s0 = inlined_call_operand.hbm [shape: f32[12,768], index: 0, kind: input, shape index: {}]
  %s1 = inlined_call_operand.hbm [shape: bf16[768,768], index: 1, kind: input, shape index: {}]
  %s2 = inlined_call_operand.hbm [shape: f32[1,768], index: 2, kind: input, shape index: {}]
  %s3 = inlined_call_operand.hbm [shape: f32[12,768], index: 3, kind: output, shape index: {}]
  %s4 = sld [smem:[#allocation0]]
  $region57: #{tpu_custom_call.1} parent=0
    _
  %s6 = ssub.s32 1, %s4
  %s7 = scalar_select 0, %s6, %s4
  $region1: #{tpu_custom_call.1} parent=0
    #allocation2 [shape = 'u8[49152]{0}', space=vmem, size = 0xc000, scoped, tag = 'input window, operand 0']
    #allocation3 [shape = 's32[2]{0}', space=sflag, size = 0x8, scoped, tag = 'scoped memory for tpu_custom_call.1']
    #allocation4 [shape = 's32[2]{0}', space=sflag, size = 0x8, scoped, tag = 'scoped memory for tpu_custom_call.1']
    #allocation5 [shape = 'u8[1179648]{0}', space=vmem, size = 0x120000, scoped, tag = 'input window, operand 1, single buffered']
    #allocation6 [shape = 's32[1]{0}', space=sflag, size = 0x4, scoped, tag = 'scoped memory for tpu_custom_call.1']
    #allocation7 [shape = 'u8[3072]{0}', space=vmem, size = 0xc00, scoped, tag = 'input window, operand 2, single buffered']
    #allocation8 [shape = 'u8[49152]{0}', space=vmem, size = 0xc000, scoped, tag = 'output window, operand 0']
    %8 = vsyncpa [#allocation3], 0
    %s9 = scalar_lea.sflag [#allocation3], 1
    %10 = vsyncpa %s9, 0
    %11 = vsyncpa [#allocation6], 0
    %12 = vsyncpa [#allocation4], 0
    %s13 = scalar_lea.sflag [#allocation4], 1
    %14 = vsyncpa %s13, 0
    loop: start=0, step=1, limit=4
    $region2: #{tpu_custom_call.1} parent=1 // loop_pre_header
      _
    $region3: #{tpu_custom_call.1} parent=1 // loop_header
      %s16 = sphi 0, %s20
      %p17 = scmp.ge.s32.totalorder %s16, 4
      %s26 = sphi 0, %s28
      %s29 = sphi 0, %s26
      %s30 = sphi 0, %s29
      %s46 = sphi 0, %s30
      %s50 = sphi 0, %s50
      %s52 = sphi 0, %s50
      %s53 = sphi 0, %s52
      %s67 = sphi 0, %s53
      %s71 = sphi 0, %s71
      %s73 = sphi 0, %s71
      %s74 = sphi 0, %s73
      %s88 = sphi 0, %s74
      %s94 = sphi 0, %s96
      %s97 = sphi 0, %s94
      %s98 = sphi 0, %s97
      %s114 = sphi 0, %s98
    $region4: #{tpu_custom_call.1} parent=1 // loop_header_branch
      %19 = sbr.rel (%p17) target = $region8
    $region5: #{tpu_custom_call.1} parent=1 // loop_body
      %s21 = ssub.s32 %s16, 1
      %s22 = ssub.s32 %s16, 2
      %s23 = sadd.s32 %s16, 1
      %s24 = ssub.s32 %s16, %s23
      %p25 = scmp.eq.s32.totalorder %s24, 0
      %s27 = sadd.s32 %s26, 1
      %s28 = scalar_select %p25, %s26, %s27
      %p31 = pneg %p25
      %p32 = scmp.eq.s32.totalorder %s16, 1
      %p33 = por %p31, %p32
      %p34 = scmp.ne.s32.totalorder %s26, %s29
      %p35 = scmp.eq.s32.totalorder %s16, 0
      %p36 = por %p34, %p35
      %p37 = scmp.ne.s32.totalorder %s26, %s29
      %p38 = scmp.eq.s32.totalorder %s21, 1
      %p39 = por %p37, %p38
      %p40 = scmp.ne.s32.totalorder %s29, %s30
      %p41 = scmp.eq.s32.totalorder %s21, 0
      %p42 = por %p40, %p41
      %p43 = scmp.ne.s32.totalorder %s29, %s30
      %p44 = scmp.eq.s32.totalorder %s22, 1
      %p45 = por %p43, %p44
      %p47 = scmp.ne.s32.totalorder %s30, %s46
      %p48 = scmp.eq.s32.totalorder %s22, 0
      %p49 = por %p47, %p48
      %s51 = sadd.s32 %s50, 1
      %p54 = scmp.eq.s32.totalorder %s16, 1
      %p55 = scmp.ne.s32.totalorder %s50, %s52
      %p56 = scmp.eq.s32.totalorder %s16, 0
      %p57 = por %p55, %p56
      %p58 = scmp.ne.s32.totalorder %s50, %s52
      %p59 = scmp.eq.s32.totalorder %s21, 1
      %p60 = por %p58, %p59
      %p61 = scmp.ne.s32.totalorder %s52, %s53
      %p62 = scmp.eq.s32.totalorder %s21, 0
      %p63 = por %p61, %p62
      %p64 = scmp.ne.s32.totalorder %s52, %s53
      %p65 = scmp.eq.s32.totalorder %s22, 1
      %p66 = por %p64, %p65
      %p68 = scmp.ne.s32.totalorder %s53, %s67
      %p69 = scmp.eq.s32.totalorder %s22, 0
      %p70 = por %p68, %p69
      %s72 = sadd.s32 %s71, 1
      %p75 = scmp.eq.s32.totalorder %s16, 1
      %p76 = scmp.ne.s32.totalorder %s71, %s73
      %p77 = scmp.eq.s32.totalorder %s16, 0
      %p78 = por %p76, %p77
      %p79 = scmp.ne.s32.totalorder %s71, %s73
      %p80 = scmp.eq.s32.totalorder %s21, 1
      %p81 = por %p79, %p80
      %p82 = scmp.ne.s32.totalorder %s73, %s74
      %p83 = scmp.eq.s32.totalorder %s21, 0
      %p84 = por %p82, %p83
      %p85 = scmp.ne.s32.totalorder %s73, %s74
      %p86 = scmp.eq.s32.totalorder %s22, 1
      %p87 = por %p85, %p86
      %p89 = scmp.ne.s32.totalorder %s74, %s88
      %p90 = scmp.eq.s32.totalorder %s22, 0
      %p91 = por %p89, %p90
      %s92 = ssub.s32 %s16, %s23
      %p93 = scmp.eq.s32.totalorder %s92, 0
      %s95 = sadd.s32 %s94, 1
      %s96 = scalar_select %p93, %s94, %s95
      %p99 = pneg %p93
      %p100 = scmp.eq.s32.totalorder %s16, 1
      %p101 = por %p99, %p100
      %p102 = scmp.ne.s32.totalorder %s94, %s97
      %p103 = scmp.eq.s32.totalorder %s16, 0
      %p104 = por %p102, %p103
      %p105 = scmp.ne.s32.totalorder %s94, %s97
      %p106 = scmp.eq.s32.totalorder %s21, 1
      %p107 = por %p105, %p106
      %p108 = scmp.ne.s32.totalorder %s97, %s98
      %p109 = scmp.eq.s32.totalorder %s21, 0
      %p110 = por %p108, %p109
      %p111 = scmp.ne.s32.totalorder %s97, %s98
      %p112 = scmp.eq.s32.totalorder %s22, 1
      %p113 = por %p111, %p112
      %p115 = scmp.ne.s32.totalorder %s98, %s114
      %p116 = scmp.eq.s32.totalorder %s22, 0
      %p117 = por %p115, %p116
      %p118 = scmp.le.s32.totalorder 1, %s16
      %p119 = scmp.lt.s32.totalorder %s16, 3
      %p120 = pnand %p118, %p119
      %p121 = pneg %p120
      // Predicated region
      $region9: #{tpu_custom_call.1} parent=5 // pred_check
        _
      $region10: #{tpu_custom_call.1} parent=5 // pred_check_branch
        %123 = sbr.rel (%p120) target = $region12
      $region11: #{tpu_custom_call.1} parent=5 // pred_region
        %s124 = ssub.s32 %s16, 1
        // Predicated region
        $region13: #{tpu_custom_call.1} parent=11 // pred_check
          %p125 = pneg %p63
        $region14: #{tpu_custom_call.1} parent=11 // pred_check_branch
          %127 = sbr.rel (%p125) target = $region16
        $region15: #{tpu_custom_call.1} parent=11 // pred_region
          %129 = vsyncadd [#allocation6], 0
          %s130 = sshll.u32 %s1, 4
          %s131 = int_to_ptr.hbm [resolvable:$true] %s130
          %s132 = sshll.u32 [#allocation5], 4
          %s133 = int_to_ptr.vmem [resolvable:$true] %s132
          %138 = dma.hbm_to_vmem [thread:$0]  %s131, 36864, %s133, [#allocation6], 384, 384, 24
        $region16: #{tpu_custom_call.1} parent=11 // pred_fallthru
          _
        // Predicated region
        $region17: #{tpu_custom_call.1} parent=11 // pred_check
          %p139 = pneg %p84
        $region18: #{tpu_custom_call.1} parent=11 // pred_check_branch
          %141 = sbr.rel (%p139) target = $region20
        $region19: #{tpu_custom_call.1} parent=11 // pred_region
          %143 = vsyncadd [#allocation6], 0
          %s145 = sshll.u32 %s2, 4
          %s146 = int_to_ptr.hbm [resolvable:$true] %s145
          %s147 = sshll.u32 [#allocation7], 4
          %s148 = int_to_ptr.vmem [resolvable:$true] %s147
          %150 = dma.hbm_to_vmem [thread:$0]  %s146, 96, %s148, [#allocation6]
        $region20: #{tpu_custom_call.1} parent=11 // pred_fallthru
          _
      $region12: #{tpu_custom_call.1} parent=5 // pred_fallthru
        _
      %p151 = scmp.lt.s32.totalorder %s16, 2
      // Predicated region
      $region21: #{tpu_custom_call.1} parent=5 // pred_check
        %p152 = pneg %p151
      $region22: #{tpu_custom_call.1} parent=5 // pred_check_branch
        %154 = sbr.rel (%p152) target = $region24
      $region23: #{tpu_custom_call.1} parent=5 // pred_region
        // Predicated region
        $region25: #{tpu_custom_call.1} parent=23 // pred_check
          %p155 = pneg %p36
        $region26: #{tpu_custom_call.1} parent=23 // pred_check_branch
          %157 = sbr.rel (%p155) target = $region28
        $region27: #{tpu_custom_call.1} parent=23 // pred_region
          %s158 = sand.u32 %s26, 1
          %s159 = scalar_lea.sflag [#allocation3], %s158
          %s160 = sand.u32 %s26, 1
          %s161 = smul.addr %s160, 48
          %s162 = scalar_lea.vmem [#allocation2], %s161
          %164 = vsyncadd %s159, 0
          %s165 = smul.addr %s16, 6
          %s166 = smul.addr %s165, 8
          %s167 = scalar_lea.hbm %s0, %s166
          %s169 = sshll.u32 %s167, 4
          %s170 = int_to_ptr.hbm [resolvable:$true] %s169
          %s171 = sshll.u32 %s162, 4
          %s172 = int_to_ptr.vmem [resolvable:$true] %s171
          %174 = dma.hbm_to_vmem [thread:$0]  %s170, 768, %s172, %s159
        $region28: #{tpu_custom_call.1} parent=23 // pred_fallthru
          _
      $region24: #{tpu_custom_call.1} parent=5 // pred_fallthru
        _
      %p175 = scmp.le.s32.totalorder 1, %s16
      %p176 = scmp.lt.s32.totalorder %s16, 3
      %p177 = pnand %p175, %p176
      %p178 = pneg %p177
      // Predicated region
      $region29: #{tpu_custom_call.1} parent=5 // pred_check
        _
      $region30: #{tpu_custom_call.1} parent=5 // pred_check_branch
        %180 = sbr.rel (%p177) target = $region32
      $region31: #{tpu_custom_call.1} parent=5 // pred_region
        %s181 = ssub.s32 %s16, 1
        %s182 = sand.u32 %s29, 1
        %s183 = scalar_lea.sflag [#allocation3], %s182
        %s184 = sand.u32 %s29, 1
        %s185 = smul.addr %s184, 48
        %s186 = scalar_lea.vmem [#allocation2], %s185
        // Predicated region
        $region33: #{tpu_custom_call.1} parent=31 // pred_check
          %p187 = pneg %p42
        $region34: #{tpu_custom_call.1} parent=31 // pred_check_branch
          %189 = sbr.rel (%p187) target = $region36
        $region35: #{tpu_custom_call.1} parent=31 // pred_region
          %191 = dma.done %s183, 768
        $region36: #{tpu_custom_call.1} parent=31 // pred_fallthru
          _
        // Predicated region
        $region37: #{tpu_custom_call.1} parent=31 // pred_check
          %p192 = pneg %p63
        $region38: #{tpu_custom_call.1} parent=31 // pred_check_branch
          %194 = sbr.rel (%p192) target = $region40
        $region39: #{tpu_custom_call.1} parent=31 // pred_region
          %196 = dma.done [#allocation6], 36864
        $region40: #{tpu_custom_call.1} parent=31 // pred_fallthru
          _
        // Predicated region
        $region41: #{tpu_custom_call.1} parent=31 // pred_check
          %p197 = pneg %p84
        $region42: #{tpu_custom_call.1} parent=31 // pred_check_branch
          %199 = sbr.rel (%p197) target = $region44
        $region43: #{tpu_custom_call.1} parent=31 // pred_region
          %201 = dma.done [#allocation6], 96
        $region44: #{tpu_custom_call.1} parent=31 // pred_fallthru
          _
        %s202 = sand.u32 %s29, 1
        %s203 = scalar_lea.sflag [#allocation3], %s202
        %s204 = sand.u32 %s29, 1
        %s205 = smul.addr %s204, 48
        %s206 = scalar_lea.vmem [#allocation2], %s205
        %p207 = pneg %p42
        %p208 = pneg %p39
        %p209 = pneg %p63
        %p210 = pneg %p60
        %p211 = pneg %p84
        %p212 = pneg %p81
        %p213 = pneg %p110
        %p214 = pneg %p107
        %s215 = sand.u32 %s97, 1
        %s216 = scalar_lea.sflag [#allocation4], %s215
        %s217 = sand.u32 %s97, 1
        %s218 = smul.addr %s217, 48
        %s219 = scalar_lea.vmem [#allocation8], %s218
        %v220 = vld [vmem:[%s186] sm:$0xff]
        %v221 = vld [vmem:[%s186 + $0x8] sm:$0xff]
        %v222 = vld [vmem:[%s186 + $0x10] sm:$0xff]
        %v223 = vld [vmem:[%s186 + $0x18] sm:$0xff]
        %v224 = vld [vmem:[%s186 + $0x20] sm:$0xff]
        %v225 = vld [vmem:[%s186 + $0x28] sm:$0xff]
        %v226 = vpack.c.bf16 %v220, %v220
        %v227 = vpack.c.bf16 %v221, %v221
        %v228 = vpack.c.bf16 %v222, %v222
        %v229 = vpack.c.bf16 %v223, %v223
        %v230 = vpack.c.bf16 %v224, %v224
        %v231 = vpack.c.bf16 %v225, %v225
        %v232 = vld [vmem:[#allocation5] sm:$0xff]
        %v233 = vld [vmem:[#allocation5 + $0x8] sm:$0xff]
        %v234 = vld [vmem:[#allocation5 + $0x10] sm:$0xff]
        %v235 = vld [vmem:[#allocation5 + $0x18] sm:$0xff]
        %v236 = vld [vmem:[#allocation5 + $0x20] sm:$0xff]
        %v237 = vld [vmem:[#allocation5 + $0x28] sm:$0xff]
        %v238 = vld [vmem:[#allocation5 + $0x30] sm:$0xff]
        %v239 = vld [vmem:[#allocation5 + $0x38] sm:$0xff]
        %v240 = vld [vmem:[#allocation5 + $0x40] sm:$0xff]
        %v241 = vld [vmem:[#allocation5 + $0x48] sm:$0xff]
        %v242 = vld [vmem:[#allocation5 + $0x50] sm:$0xff]
        %v243 = vld [vmem:[#allocation5 + $0x58] sm:$0xff]
        %v244 = vld [vmem:[#allocation5 + $0x60] sm:$0xff]
        %v245 = vld [vmem:[#allocation5 + $0x68] sm:$0xff]
        %v246 = vld [vmem:[#allocation5 + $0x70] sm:$0xff]
        %v247 = vld [vmem:[#allocation5 + $0x78] sm:$0xff]
        %v248 = vld [vmem:[#allocation5 + $0x80] sm:$0xff]
        %v249 = vld [vmem:[#allocation5 + $0x88] sm:$0xff]
        %v250 = vld [vmem:[#allocation5 + $0x90] sm:$0xff]
        %v251 = vld [vmem:[#allocation5 + $0x98] sm:$0xff]
        %v252 = vld [vmem:[#allocation5 + $0xa0] sm:$0xff]
        %v253 = vld [vmem:[#allocation5 + $0xa8] sm:$0xff]
        %v254 = vld [vmem:[#allocation5 + $0xb0] sm:$0xff]
        %v255 = vld [vmem:[#allocation5 + $0xb8] sm:$0xff]
        %v256 = vld [vmem:[#allocation5 + $0xc0] sm:$0xff]
        %v257 = vld [vmem:[#allocation5 + $0xc8] sm:$0xff]
        %v258 = vld [vmem:[#allocation5 + $0xd0] sm:$0xff]
        %v259 = vld [vmem:[#allocation5 + $0xd8] sm:$0xff]
        %v260 = vld [vmem:[#allocation5 + $0xe0] sm:$0xff]
        %v261 = vld [vmem:[#allocation5 + $0xe8] sm:$0xff]
        %v262 = vld [vmem:[#allocation5 + $0xf0] sm:$0xff]
        %v263 = vld [vmem:[#allocation5 + $0xf8] sm:$0xff]
        %v264 = vld [vmem:[#allocation5 + $0x100] sm:$0xff]
        %v265 = vld [vmem:[#allocation5 + $0x108] sm:$0xff]
        %v266 = vld [vmem:[#allocation5 + $0x110] sm:$0xff]
        %v267 = vld [vmem:[#allocation5 + $0x118] sm:$0xff]
        %v268 = vld [vmem:[#allocation5 + $0x120] sm:$0xff]
        %v269 = vld [vmem:[#allocation5 + $0x128] sm:$0xff]
        %v270 = vld [vmem:[#allocation5 + $0x130] sm:$0xff]
        %v271 = vld [vmem:[#allocation5 + $0x138] sm:$0xff]
        %v272 = vld [vmem:[#allocation5 + $0x140] sm:$0xff]
        %v273 = vld [vmem:[#allocation5 + $0x148] sm:$0xff]
        %v274 = vld [vmem:[#allocation5 + $0x150] sm:$0xff]
        %v275 = vld [vmem:[#allocation5 + $0x158] sm:$0xff]
        %v276 = vld [vmem:[#allocation5 + $0x160] sm:$0xff]
        %v277 = vld [vmem:[#allocation5 + $0x168] sm:$0xff]
        %v278 = vld [vmem:[#allocation5 + $0x170] sm:$0xff]
        %v279 = vld [vmem:[#allocation5 + $0x178] sm:$0xff]
        %v280 = vld [vmem:[#allocation5 + $0x180] sm:$0xff]
        %v281 = vld [vmem:[#allocation5 + $0x188] sm:$0xff]
        %v282 = vld [vmem:[#allocation5 + $0x190] sm:$0xff]
        %v283 = vld [vmem:[#allocation5 + $0x198] sm:$0xff]
        %v284 = vld [vmem:[#allocation5 + $0x1a0] sm:$0xff]
        %v285 = vld [vmem:[#allocation5 + $0x1a8] sm:$0xff]
        %v286 = vld [vmem:[#allocation5 + $0x1b0] sm:$0xff]
        %v287 = vld [vmem:[#allocation5 + $0x1b8] sm:$0xff]
        %v288 = vld [vmem:[#allocation5 + $0x1c0] sm:$0xff]
        %v289 = vld [vmem:[#allocation5 + $0x1c8] sm:$0xff]
        %v290 = vld [vmem:[#allocation5 + $0x1d0] sm:$0xff]
        %v291 = vld [vmem:[#allocation5 + $0x1d8] sm:$0xff]
        %v292 = vld [vmem:[#allocation5 + $0x1e0] sm:$0xff]
        %v293 = vld [vmem:[#allocation5 + $0x1e8] sm:$0xff]
        %v294 = vld [vmem:[#allocation5 + $0x1f0] sm:$0xff]
        %v295 = vld [vmem:[#allocation5 + $0x1f8] sm:$0xff]
        %v296 = vld [vmem:[#allocation5 + $0x200] sm:$0xff]
        %v297 = vld [vmem:[#allocation5 + $0x208] sm:$0xff]
        %v298 = vld [vmem:[#allocation5 + $0x210] sm:$0xff]
        %v299 = vld [vmem:[#allocation5 + $0x218] sm:$0xff]
        %v300 = vld [vmem:[#allocation5 + $0x220] sm:$0xff]
        %v301 = vld [vmem:[#allocation5 + $0x228] sm:$0xff]
        %v302 = vld [vmem:[#allocation5 + $0x230] sm:$0xff]
        %v303 = vld [vmem:[#allocation5 + $0x238] sm:$0xff]
        %v304 = vld [vmem:[#allocation5 + $0x240] sm:$0xff]
        %v305 = vld [vmem:[#allocation5 + $0x248] sm:$0xff]
        %v306 = vld [vmem:[#allocation5 + $0x250] sm:$0xff]
        %v307 = vld [vmem:[#allocation5 + $0x258] sm:$0xff]
        %v308 = vld [vmem:[#allocation5 + $0x260] sm:$0xff]
        %v309 = vld [vmem:[#allocation5 + $0x268] sm:$0xff]
        %v310 = vld [vmem:[#allocation5 + $0x270] sm:$0xff]
        %v311 = vld [vmem:[#allocation5 + $0x278] sm:$0xff]
        %v312 = vld [vmem:[#allocation5 + $0x280] sm:$0xff]
        %v313 = vld [vmem:[#allocation5 + $0x288] sm:$0xff]
        %v314 = vld [vmem:[#allocation5 + $0x290] sm:$0xff]
        %v315 = vld [vmem:[#allocation5 + $0x298] sm:$0xff]
        %v316 = vld [vmem:[#allocation5 + $0x2a0] sm:$0xff]
        %v317 = vld [vmem:[#allocation5 + $0x2a8] sm:$0xff]
        %v318 = vld [vmem:[#allocation5 + $0x2b0] sm:$0xff]
        %v319 = vld [vmem:[#allocation5 + $0x2b8] sm:$0xff]
        %v320 = vld [vmem:[#allocation5 + $0x2c0] sm:$0xff]
        %v321 = vld [vmem:[#allocation5 + $0x2c8] sm:$0xff]
        %v322 = vld [vmem:[#allocation5 + $0x2d0] sm:$0xff]
        %v323 = vld [vmem:[#allocation5 + $0x2d8] sm:$0xff]
        %v324 = vld [vmem:[#allocation5 + $0x2e0] sm:$0xff]
        %v325 = vld [vmem:[#allocation5 + $0x2e8] sm:$0xff]
        %v326 = vld [vmem:[#allocation5 + $0x2f0] sm:$0xff]
        %v327 = vld [vmem:[#allocation5 + $0x2f8] sm:$0xff]
        %v328 = vld [vmem:[#allocation5 + $0x300] sm:$0xff]
        %v329 = vld [vmem:[#allocation5 + $0x308] sm:$0xff]
        %v330 = vld [vmem:[#allocation5 + $0x310] sm:$0xff]
        %v331 = vld [vmem:[#allocation5 + $0x318] sm:$0xff]
        %v332 = vld [vmem:[#allocation5 + $0x320] sm:$0xff]
        %v333 = vld [vmem:[#allocation5 + $0x328] sm:$0xff]
        %v334 = vld [vmem:[#allocation5 + $0x330] sm:$0xff]
        %v335 = vld [vmem:[#allocation5 + $0x338] sm:$0xff]
        %v336 = vld [vmem:[#allocation5 + $0x340] sm:$0xff]
        %v337 = vld [vmem:[#allocation5 + $0x348] sm:$0xff]
        %v338 = vld [vmem:[#allocation5 + $0x350] sm:$0xff]
        %v339 = vld [vmem:[#allocation5 + $0x358] sm:$0xff]
        %v340 = vld [vmem:[#allocation5 + $0x360] sm:$0xff]
        %v341 = vld [vmem:[#allocation5 + $0x368] sm:$0xff]
        %v342 = vld [vmem:[#allocation5 + $0x370] sm:$0xff]
        %v343 = vld [vmem:[#allocation5 + $0x378] sm:$0xff]
        %v344 = vld [vmem:[#allocation5 + $0x380] sm:$0xff]
        %v345 = vld [vmem:[#allocation5 + $0x388] sm:$0xff]
        %v346 = vld [vmem:[#allocation5 + $0x390] sm:$0xff]
        %v347 = vld [vmem:[#allocation5 + $0x398] sm:$0xff]
        %v348 = vld [vmem:[#allocation5 + $0x3a0] sm:$0xff]
        %v349 = vld [vmem:[#allocation5 + $0x3a8] sm:$0xff]
        %v350 = vld [vmem:[#allocation5 + $0x3b0] sm:$0xff]
        %v351 = vld [vmem:[#allocation5 + $0x3b8] sm:$0xff]
        %v352 = vld [vmem:[#allocation5 + $0x3c0] sm:$0xff]
        %v353 = vld [vmem:[#allocation5 + $0x3c8] sm:$0xff]
        %v354 = vld [vmem:[#allocation5 + $0x3d0] sm:$0xff]
        %v355 = vld [vmem:[#allocation5 + $0x3d8] sm:$0xff]
        %v356 = vld [vmem:[#allocation5 + $0x3e0] sm:$0xff]
        %v357 = vld [vmem:[#allocation5 + $0x3e8] sm:$0xff]
        %v358 = vld [vmem:[#allocation5 + $0x3f0] sm:$0xff]
        %v359 = vld [vmem:[#allocation5 + $0x3f8] sm:$0xff]
        %v360 = vld [vmem:[#allocation5 + $0x400] sm:$0xff]
        %v361 = vld [vmem:[#allocation5 + $0x408] sm:$0xff]
        %v362 = vld [vmem:[#allocation5 + $0x410] sm:$0xff]
        %v363 = vld [vmem:[#allocation5 + $0x418] sm:$0xff]
        %v364 = vld [vmem:[#allocation5 + $0x420] sm:$0xff]
        %v365 = vld [vmem:[#allocation5 + $0x428] sm:$0xff]
        %v366 = vld [vmem:[#allocation5 + $0x430] sm:$0xff]
        %v367 = vld [vmem:[#allocation5 + $0x438] sm:$0xff]
        %v368 = vld [vmem:[#allocation5 + $0x440] sm:$0xff]
        %v369 = vld [vmem:[#allocation5 + $0x448] sm:$0xff]
        %v370 = vld [vmem:[#allocation5 + $0x450] sm:$0xff]
        %v371 = vld [vmem:[#allocation5 + $0x458] sm:$0xff]
        %v372 = vld [vmem:[#allocation5 + $0x460] sm:$0xff]
        %v373 = vld [vmem:[#allocation5 + $0x468] sm:$0xff]
        %v374 = vld [vmem:[#allocation5 + $0x470] sm:$0xff]
        %v375 = vld [vmem:[#allocation5 + $0x478] sm:$0xff]
        %v376 = vld [vmem:[#allocation5 + $0x480] sm:$0xff]
        %v377 = vld [vmem:[#allocation5 + $0x488] sm:$0xff]
        %v378 = vld [vmem:[#allocation5 + $0x490] sm:$0xff]
        %v379 = vld [vmem:[#allocation5 + $0x498] sm:$0xff]
        %v380 = vld [vmem:[#allocation5 + $0x4a0] sm:$0xff]
        %v381 = vld [vmem:[#allocation5 + $0x4a8] sm:$0xff]
        %v382 = vld [vmem:[#allocation5 + $0x4b0] sm:$0xff]
        %v383 = vld [vmem:[#allocation5 + $0x4b8] sm:$0xff]
        %v384 = vld [vmem:[#allocation5 + $0x4c0] sm:$0xff]
        %v385 = vld [vmem:[#allocation5 + $0x4c8] sm:$0xff]
        %v386 = vld [vmem:[#allocation5 + $0x4d0] sm:$0xff]
        %v387 = vld [vmem:[#allocation5 + $0x4d8] sm:$0xff]
        %v388 = vld [vmem:[#allocation5 + $0x4e0] sm:$0xff]
        %v389 = vld [vmem:[#allocation5 + $0x4e8] sm:$0xff]
        %v390 = vld [vmem:[#allocation5 + $0x4f0] sm:$0xff]
        %v391 = vld [vmem:[#allocation5 + $0x4f8] sm:$0xff]
        %v392 = vld [vmem:[#allocation5 + $0x500] sm:$0xff]
        %v393 = vld [vmem:[#allocation5 + $0x508] sm:$0xff]
        %v394 = vld [vmem:[#allocation5 + $0x510] sm:$0xff]
        %v395 = vld [vmem:[#allocation5 + $0x518] sm:$0xff]
        %v396 = vld [vmem:[#allocation5 + $0x520] sm:$0xff]
        %v397 = vld [vmem:[#allocation5 + $0x528] sm:$0xff]
        %v398 = vld [vmem:[#allocation5 + $0x530] sm:$0xff]
        %v399 = vld [vmem:[#allocation5 + $0x538] sm:$0xff]
        %v400 = vld [vmem:[#allocation5 + $0x540] sm:$0xff]
        %v401 = vld [vmem:[#allocation5 + $0x548] sm:$0xff]
        %v402 = vld [vmem:[#allocation5 + $0x550] sm:$0xff]
        %v403 = vld [vmem:[#allocation5 + $0x558] sm:$0xff]
        %v404 = vld [vmem:[#allocation5 + $0x560] sm:$0xff]
        %v405 = vld [vmem:[#allocation5 + $0x568] sm:$0xff]
        %v406 = vld [vmem:[#allocation5 + $0x570] sm:$0xff]
        %v407 = vld [vmem:[#allocation5 + $0x578] sm:$0xff]
        %v408 = vld [vmem:[#allocation5 + $0x580] sm:$0xff]
        %v409 = vld [vmem:[#allocation5 + $0x588] sm:$0xff]
        %v410 = vld [vmem:[#allocation5 + $0x590] sm:$0xff]
        %v411 = vld [vmem:[#allocation5 + $0x598] sm:$0xff]
        %v412 = vld [vmem:[#allocation5 + $0x5a0] sm:$0xff]
        %v413 = vld [vmem:[#allocation5 + $0x5a8] sm:$0xff]
        %v414 = vld [vmem:[#allocation5 + $0x5b0] sm:$0xff]
        %v415 = vld [vmem:[#allocation5 + $0x5b8] sm:$0xff]
        %v416 = vld [vmem:[#allocation5 + $0x5c0] sm:$0xff]
        %v417 = vld [vmem:[#allocation5 + $0x5c8] sm:$0xff]
        %v418 = vld [vmem:[#allocation5 + $0x5d0] sm:$0xff]
        %v419 = vld [vmem:[#allocation5 + $0x5d8] sm:$0xff]
        %v420 = vld [vmem:[#allocation5 + $0x5e0] sm:$0xff]
        %v421 = vld [vmem:[#allocation5 + $0x5e8] sm:$0xff]
        %v422 = vld [vmem:[#allocation5 + $0x5f0] sm:$0xff]
        %v423 = vld [vmem:[#allocation5 + $0x5f8] sm:$0xff]
        %v424 = vld [vmem:[#allocation5 + $0x600] sm:$0xff]
        %v425 = vld [vmem:[#allocation5 + $0x608] sm:$0xff]
        %v426 = vld [vmem:[#allocation5 + $0x610] sm:$0xff]
        %v427 = vld [vmem:[#allocation5 + $0x618] sm:$0xff]
        %v428 = vld [vmem:[#allocation5 + $0x620] sm:$0xff]
        %v429 = vld [vmem:[#allocation5 + $0x628] sm:$0xff]
        %v430 = vld [vmem:[#allocation5 + $0x630] sm:$0xff]
        %v431 = vld [vmem:[#allocation5 + $0x638] sm:$0xff]
        %v432 = vld [vmem:[#allocation5 + $0x640] sm:$0xff]
        %v433 = vld [vmem:[#allocation5 + $0x648] sm:$0xff]
        %v434 = vld [vmem:[#allocation5 + $0x650] sm:$0xff]
        %v435 = vld [vmem:[#allocation5 + $0x658] sm:$0xff]
        %v436 = vld [vmem:[#allocation5 + $0x660] sm:$0xff]
        %v437 = vld [vmem:[#allocation5 + $0x668] sm:$0xff]
        %v438 = vld [vmem:[#allocation5 + $0x670] sm:$0xff]
        %v439 = vld [vmem:[#allocation5 + $0x678] sm:$0xff]
        %v440 = vld [vmem:[#allocation5 + $0x680] sm:$0xff]
        %v441 = vld [vmem:[#allocation5 + $0x688] sm:$0xff]
        %v442 = vld [vmem:[#allocation5 + $0x690] sm:$0xff]
        %v443 = vld [vmem:[#allocation5 + $0x698] sm:$0xff]
        %v444 = vld [vmem:[#allocation5 + $0x6a0] sm:$0xff]
        %v445 = vld [vmem:[#allocation5 + $0x6a8] sm:$0xff]
        %v446 = vld [vmem:[#allocation5 + $0x6b0] sm:$0xff]
        %v447 = vld [vmem:[#allocation5 + $0x6b8] sm:$0xff]
        %v448 = vld [vmem:[#allocation5 + $0x6c0] sm:$0xff]
        %v449 = vld [vmem:[#allocation5 + $0x6c8] sm:$0xff]
        %v450 = vld [vmem:[#allocation5 + $0x6d0] sm:$0xff]
        %v451 = vld [vmem:[#allocation5 + $0x6d8] sm:$0xff]
        %v452 = vld [vmem:[#allocation5 + $0x6e0] sm:$0xff]
        %v453 = vld [vmem:[#allocation5 + $0x6e8] sm:$0xff]
        %v454 = vld [vmem:[#allocation5 + $0x6f0] sm:$0xff]
        %v455 = vld [vmem:[#allocation5 + $0x6f8] sm:$0xff]
        %v456 = vld [vmem:[#allocation5 + $0x700] sm:$0xff]
        %v457 = vld [vmem:[#allocation5 + $0x708] sm:$0xff]
        %v458 = vld [vmem:[#allocation5 + $0x710] sm:$0xff]
        %v459 = vld [vmem:[#allocation5 + $0x718] sm:$0xff]
        %v460 = vld [vmem:[#allocation5 + $0x720] sm:$0xff]
        %v461 = vld [vmem:[#allocation5 + $0x728] sm:$0xff]
        %v462 = vld [vmem:[#allocation5 + $0x730] sm:$0xff]
        %v463 = vld [vmem:[#allocation5 + $0x738] sm:$0xff]
        %v464 = vld [vmem:[#allocation5 + $0x740] sm:$0xff]
        %v465 = vld [vmem:[#allocation5 + $0x748] sm:$0xff]
        %v466 = vld [vmem:[#allocation5 + $0x750] sm:$0xff]
        %v467 = vld [vmem:[#allocation5 + $0x758] sm:$0xff]
        %v468 = vld [vmem:[#allocation5 + $0x760] sm:$0xff]
        %v469 = vld [vmem:[#allocation5 + $0x768] sm:$0xff]
        %v470 = vld [vmem:[#allocation5 + $0x770] sm:$0xff]
        %v471 = vld [vmem:[#allocation5 + $0x778] sm:$0xff]
        %v472 = vld [vmem:[#allocation5 + $0x780] sm:$0xff]
        %v473 = vld [vmem:[#allocation5 + $0x788] sm:$0xff]
        %v474 = vld [vmem:[#allocation5 + $0x790] sm:$0xff]
        %v475 = vld [vmem:[#allocation5 + $0x798] sm:$0xff]
        %v476 = vld [vmem:[#allocation5 + $0x7a0] sm:$0xff]
        %v477 = vld [vmem:[#allocation5 + $0x7a8] sm:$0xff]
        %v478 = vld [vmem:[#allocation5 + $0x7b0] sm:$0xff]
        %v479 = vld [vmem:[#allocation5 + $0x7b8] sm:$0xff]
        %v480 = vld [vmem:[#allocation5 + $0x7c0] sm:$0xff]
        %v481 = vld [vmem:[#allocation5 + $0x7c8] sm:$0xff]
        %v482 = vld [vmem:[#allocation5 + $0x7d0] sm:$0xff]
        %v483 = vld [vmem:[#allocation5 + $0x7d8] sm:$0xff]
        %v484 = vld [vmem:[#allocation5 + $0x7e0] sm:$0xff]
        %v485 = vld [vmem:[#allocation5 + $0x7e8] sm:$0xff]
        %v486 = vld [vmem:[#allocation5 + $0x7f0] sm:$0xff]
        %v487 = vld [vmem:[#allocation5 + $0x7f8] sm:$0xff]
        %v488 = vld [vmem:[#allocation5 + $0x800] sm:$0xff]
        %v489 = vld [vmem:[#allocation5 + $0x808] sm:$0xff]
        %v490 = vld [vmem:[#allocation5 + $0x810] sm:$0xff]
        %v491 = vld [vmem:[#allocation5 + $0x818] sm:$0xff]
        %v492 = vld [vmem:[#allocation5 + $0x820] sm:$0xff]
        %v493 = vld [vmem:[#allocation5 + $0x828] sm:$0xff]
        %v494 = vld [vmem:[#allocation5 + $0x830] sm:$0xff]
        %v495 = vld [vmem:[#allocation5 + $0x838] sm:$0xff]
        %v496 = vld [vmem:[#allocation5 + $0x840] sm:$0xff]
        %v497 = vld [vmem:[#allocation5 + $0x848] sm:$0xff]
        %v498 = vld [vmem:[#allocation5 + $0x850] sm:$0xff]
        %v499 = vld [vmem:[#allocation5 + $0x858] sm:$0xff]
        %v500 = vld [vmem:[#allocation5 + $0x860] sm:$0xff]
        %v501 = vld [vmem:[#allocation5 + $0x868] sm:$0xff]
        %v502 = vld [vmem:[#allocation5 + $0x870] sm:$0xff]
        %v503 = vld [vmem:[#allocation5 + $0x878] sm:$0xff]
        %v504 = vld [vmem:[#allocation5 + $0x880] sm:$0xff]
        %v505 = vld [vmem:[#allocation5 + $0x888] sm:$0xff]
        %v506 = vld [vmem:[#allocation5 + $0x890] sm:$0xff]
        %v507 = vld [vmem:[#allocation5 + $0x898] sm:$0xff]
        %v508 = vld [vmem:[#allocation5 + $0x8a0] sm:$0xff]
        %v509 = vld [vmem:[#allocation5 + $0x8a8] sm:$0xff]
        %v510 = vld [vmem:[#allocation5 + $0x8b0] sm:$0xff]
        %v511 = vld [vmem:[#allocation5 + $0x8b8] sm:$0xff]
        %v512 = vld [vmem:[#allocation5 + $0x8c0] sm:$0xff]
        %v513 = vld [vmem:[#allocation5 + $0x8c8] sm:$0xff]
        %v514 = vld [vmem:[#allocation5 + $0x8d0] sm:$0xff]
        %v515 = vld [vmem:[#allocation5 + $0x8d8] sm:$0xff]
        %v516 = vld [vmem:[#allocation5 + $0x8e0] sm:$0xff]
        %v517 = vld [vmem:[#allocation5 + $0x8e8] sm:$0xff]
        %v518 = vld [vmem:[#allocation5 + $0x8f0] sm:$0xff]
        %v519 = vld [vmem:[#allocation5 + $0x8f8] sm:$0xff]
        %v520 = vld [vmem:[#allocation7] sm:$0x3f]
        %v522 = vperm.slane %v520, 0
        %v523 = vperm.slane %v520, 1
        %v524 = vperm.slane %v520, 2
        %v525 = vperm.slane %v520, 3
        %v526 = vperm.slane %v520, 4
        %v527 = vperm.slane %v520, 5
        %v822 = vunpack.c.l.b16 %v232
        %v823 = vunpack.c.h.b16 %v232
        %v824 = vunpack.c.l.b16 %v233
        %v825 = vunpack.c.h.b16 %v233
        %v826 = vunpack.c.l.b16 %v234
        %v827 = vunpack.c.h.b16 %v234
        %v828 = vunpack.c.l.b16 %v235
        %v829 = vunpack.c.h.b16 %v235
        %v830 = vunpack.c.l.b16 %v236
        %v831 = vunpack.c.h.b16 %v236
        %v832 = vunpack.c.l.b16 %v237
        %v833 = vunpack.c.h.b16 %v237
        %v834 = vunpack.c.l.b16 %v238
        %v835 = vunpack.c.h.b16 %v238
        %v836 = vunpack.c.l.b16 %v239
        %v837 = vunpack.c.h.b16 %v239
        %v838 = vunpack.c.l.b16 %v240
        %v839 = vunpack.c.h.b16 %v240
        %v840 = vunpack.c.l.b16 %v241
        %v841 = vunpack.c.h.b16 %v241
        %v842 = vunpack.c.l.b16 %v242
        %v843 = vunpack.c.h.b16 %v242
        %v844 = vunpack.c.l.b16 %v243
        %v845 = vunpack.c.h.b16 %v243
        %v846 = vunpack.c.l.b16 %v244
        %v847 = vunpack.c.h.b16 %v244
        %v848 = vunpack.c.l.b16 %v245
        %v849 = vunpack.c.h.b16 %v245
        %v850 = vunpack.c.l.b16 %v246
        %v851 = vunpack.c.h.b16 %v246
        %v852 = vunpack.c.l.b16 %v247
        %v853 = vunpack.c.h.b16 %v247
        %v854 = vunpack.c.l.b16 %v248
        %v855 = vunpack.c.h.b16 %v248
        %v856 = vunpack.c.l.b16 %v249
        %v857 = vunpack.c.h.b16 %v249
        %v858 = vunpack.c.l.b16 %v250
        %v859 = vunpack.c.h.b16 %v250
        %v860 = vunpack.c.l.b16 %v251
        %v861 = vunpack.c.h.b16 %v251
        %v862 = vunpack.c.l.b16 %v252
        %v863 = vunpack.c.h.b16 %v252
        %v864 = vunpack.c.l.b16 %v253
        %v865 = vunpack.c.h.b16 %v253
        %v866 = vunpack.c.l.b16 %v254
        %v867 = vunpack.c.h.b16 %v254
        %v868 = vunpack.c.l.b16 %v255
        %v869 = vunpack.c.h.b16 %v255
        %v870 = vunpack.c.l.b16 %v256
        %v871 = vunpack.c.h.b16 %v256
        %v872 = vunpack.c.l.b16 %v257
        %v873 = vunpack.c.h.b16 %v257
        %v874 = vunpack.c.l.b16 %v258
        %v875 = vunpack.c.h.b16 %v258
        %v876 = vunpack.c.l.b16 %v259
        %v877 = vunpack.c.h.b16 %v259
        %v878 = vunpack.c.l.b16 %v260
        %v879 = vunpack.c.h.b16 %v260
        %v880 = vunpack.c.l.b16 %v261
        %v881 = vunpack.c.h.b16 %v261
        %v882 = vunpack.c.l.b16 %v262
        %v883 = vunpack.c.h.b16 %v262
        %v884 = vunpack.c.l.b16 %v263
        %v885 = vunpack.c.h.b16 %v263
        %v886 = vunpack.c.l.b16 %v264
        %v887 = vunpack.c.h.b16 %v264
        %v888 = vunpack.c.l.b16 %v265
        %v889 = vunpack.c.h.b16 %v265
        %v890 = vunpack.c.l.b16 %v266
        %v891 = vunpack.c.h.b16 %v266
        %v892 = vunpack.c.l.b16 %v267
        %v893 = vunpack.c.h.b16 %v267
        %v894 = vunpack.c.l.b16 %v268
        %v895 = vunpack.c.h.b16 %v268
        %v896 = vunpack.c.l.b16 %v269
        %v897 = vunpack.c.h.b16 %v269
        %v898 = vunpack.c.l.b16 %v270
        %v899 = vunpack.c.h.b16 %v270
        %v900 = vunpack.c.l.b16 %v271
        %v901 = vunpack.c.h.b16 %v271
        %v902 = vunpack.c.l.b16 %v272
        %v903 = vunpack.c.h.b16 %v272
        %v904 = vunpack.c.l.b16 %v273
        %v905 = vunpack.c.h.b16 %v273
        %v906 = vunpack.c.l.b16 %v274
        %v907 = vunpack.c.h.b16 %v274
        %v908 = vunpack.c.l.b16 %v275
        %v909 = vunpack.c.h.b16 %v275
        %v910 = vunpack.c.l.b16 %v276
        %v911 = vunpack.c.h.b16 %v276
        %v912 = vunpack.c.l.b16 %v277
        %v913 = vunpack.c.h.b16 %v277
        %v914 = vunpack.c.l.b16 %v278
        %v915 = vunpack.c.h.b16 %v278
        %v916 = vunpack.c.l.b16 %v279
        %v917 = vunpack.c.h.b16 %v279
        %v918 = vunpack.c.l.b16 %v280
        %v919 = vunpack.c.h.b16 %v280
        %v920 = vunpack.c.l.b16 %v281
        %v921 = vunpack.c.h.b16 %v281
        %v922 = vunpack.c.l.b16 %v282
        %v923 = vunpack.c.h.b16 %v282
        %v924 = vunpack.c.l.b16 %v283
        %v925 = vunpack.c.h.b16 %v283
        %v926 = vunpack.c.l.b16 %v284
        %v927 = vunpack.c.h.b16 %v284
        %v928 = vunpack.c.l.b16 %v285
        %v929 = vunpack.c.h.b16 %v285
        %v930 = vunpack.c.l.b16 %v286
        %v931 = vunpack.c.h.b16 %v286
        %v932 = vunpack.c.l.b16 %v287
        %v933 = vunpack.c.h.b16 %v287
        %v934 = vunpack.c.l.b16 %v288
        %v935 = vunpack.c.h.b16 %v288
        %v936 = vunpack.c.l.b16 %v289
        %v937 = vunpack.c.h.b16 %v289
        %v938 = vunpack.c.l.b16 %v290
        %v939 = vunpack.c.h.b16 %v290
        %v940 = vunpack.c.l.b16 %v291
        %v941 = vunpack.c.h.b16 %v291
        %v942 = vunpack.c.l.b16 %v292
        %v943 = vunpack.c.h.b16 %v292
        %v944 = vunpack.c.l.b16 %v293
        %v945 = vunpack.c.h.b16 %v293
        %v946 = vunpack.c.l.b16 %v294
        %v947 = vunpack.c.h.b16 %v294
        %v948 = vunpack.c.l.b16 %v295
        %v949 = vunpack.c.h.b16 %v295
        %v950 = vunpack.c.l.b16 %v296
        %v951 = vunpack.c.h.b16 %v296
        %v952 = vunpack.c.l.b16 %v297
        %v953 = vunpack.c.h.b16 %v297
        %v954 = vunpack.c.l.b16 %v298
        %v955 = vunpack.c.h.b16 %v298
        %v956 = vunpack.c.l.b16 %v299
        %v957 = vunpack.c.h.b16 %v299
        %v958 = vunpack.c.l.b16 %v300
        %v959 = vunpack.c.h.b16 %v300
        %v960 = vunpack.c.l.b16 %v301
        %v961 = vunpack.c.h.b16 %v301
        %v962 = vunpack.c.l.b16 %v302
        %v963 = vunpack.c.h.b16 %v302
        %v964 = vunpack.c.l.b16 %v303
        %v965 = vunpack.c.h.b16 %v303
        %v966 = vunpack.c.l.b16 %v304
        %v967 = vunpack.c.h.b16 %v304
        %v968 = vunpack.c.l.b16 %v305
        %v969 = vunpack.c.h.b16 %v305
        %v970 = vunpack.c.l.b16 %v306
        %v971 = vunpack.c.h.b16 %v306
        %v972 = vunpack.c.l.b16 %v307
        %v973 = vunpack.c.h.b16 %v307
        %v974 = vunpack.c.l.b16 %v308
        %v975 = vunpack.c.h.b16 %v308
        %v976 = vunpack.c.l.b16 %v309
        %v977 = vunpack.c.h.b16 %v309
        %v978 = vunpack.c.l.b16 %v310
        %v979 = vunpack.c.h.b16 %v310
        %v980 = vunpack.c.l.b16 %v311
        %v981 = vunpack.c.h.b16 %v311
        %v982 = vunpack.c.l.b16 %v312
        %v983 = vunpack.c.h.b16 %v312
        %v984 = vunpack.c.l.b16 %v313
        %v985 = vunpack.c.h.b16 %v313
        %v986 = vunpack.c.l.b16 %v314
        %v987 = vunpack.c.h.b16 %v314
        %v988 = vunpack.c.l.b16 %v315
        %v989 = vunpack.c.h.b16 %v315
        %v990 = vunpack.c.l.b16 %v316
        %v991 = vunpack.c.h.b16 %v316
        %v992 = vunpack.c.l.b16 %v317
        %v993 = vunpack.c.h.b16 %v317
        %v994 = vunpack.c.l.b16 %v318
        %v995 = vunpack.c.h.b16 %v318
        %v996 = vunpack.c.l.b16 %v319
        %v997 = vunpack.c.h.b16 %v319
        %v998 = vunpack.c.l.b16 %v320
        %v999 = vunpack.c.h.b16 %v320
        %v1000 = vunpack.c.l.b16 %v321
        %v1001 = vunpack.c.h.b16 %v321
        %v1002 = vunpack.c.l.b16 %v322
        %v1003 = vunpack.c.h.b16 %v322
        %v1004 = vunpack.c.l.b16 %v323
        %v1005 = vunpack.c.h.b16 %v323
        %v1006 = vunpack.c.l.b16 %v324
        %v1007 = vunpack.c.h.b16 %v324
        %v1008 = vunpack.c.l.b16 %v325
        %v1009 = vunpack.c.h.b16 %v325
        %v1010 = vunpack.c.l.b16 %v326
        %v1011 = vunpack.c.h.b16 %v326
        %v1012 = vunpack.c.l.b16 %v327
        %v1013 = vunpack.c.h.b16 %v327
        %v1014 = vunpack.c.l.b16 %v328
        %v1015 = vunpack.c.h.b16 %v328
        %v1016 = vunpack.c.l.b16 %v329
        %v1017 = vunpack.c.h.b16 %v329
        %v1018 = vunpack.c.l.b16 %v330
        %v1019 = vunpack.c.h.b16 %v330
        %v1020 = vunpack.c.l.b16 %v331
        %v1021 = vunpack.c.h.b16 %v331
        %v1022 = vunpack.c.l.b16 %v332
        %v1023 = vunpack.c.h.b16 %v332
        %v1024 = vunpack.c.l.b16 %v333
        %v1025 = vunpack.c.h.b16 %v333
        %v1026 = vunpack.c.l.b16 %v334
        %v1027 = vunpack.c.h.b16 %v334
        %v1028 = vunpack.c.l.b16 %v335
        %v1029 = vunpack.c.h.b16 %v335
        %v1030 = vunpack.c.l.b16 %v336
        %v1031 = vunpack.c.h.b16 %v336
        %v1032 = vunpack.c.l.b16 %v337
        %v1033 = vunpack.c.h.b16 %v337
        %v1034 = vunpack.c.l.b16 %v338
        %v1035 = vunpack.c.h.b16 %v338
        %v1036 = vunpack.c.l.b16 %v339
        %v1037 = vunpack.c.h.b16 %v339
        %v1038 = vunpack.c.l.b16 %v340
        %v1039 = vunpack.c.h.b16 %v340
        %v1040 = vunpack.c.l.b16 %v341
        %v1041 = vunpack.c.h.b16 %v341
        %v1042 = vunpack.c.l.b16 %v342
        %v1043 = vunpack.c.h.b16 %v342
        %v1044 = vunpack.c.l.b16 %v343
        %v1045 = vunpack.c.h.b16 %v343
        %v1046 = vunpack.c.l.b16 %v344
        %v1047 = vunpack.c.h.b16 %v344
        %v1048 = vunpack.c.l.b16 %v345
        %v1049 = vunpack.c.h.b16 %v345
        %v1050 = vunpack.c.l.b16 %v346
        %v1051 = vunpack.c.h.b16 %v346
        %v1052 = vunpack.c.l.b16 %v347
        %v1053 = vunpack.c.h.b16 %v347
        %v1054 = vunpack.c.l.b16 %v348
        %v1055 = vunpack.c.h.b16 %v348
        %v1056 = vunpack.c.l.b16 %v349
        %v1057 = vunpack.c.h.b16 %v349
        %v1058 = vunpack.c.l.b16 %v350
        %v1059 = vunpack.c.h.b16 %v350
        %v1060 = vunpack.c.l.b16 %v351
        %v1061 = vunpack.c.h.b16 %v351
        %v1062 = vunpack.c.l.b16 %v352
        %v1063 = vunpack.c.h.b16 %v352
        %v1064 = vunpack.c.l.b16 %v353
        %v1065 = vunpack.c.h.b16 %v353
        %v1066 = vunpack.c.l.b16 %v354
        %v1067 = vunpack.c.h.b16 %v354
        %v1068 = vunpack.c.l.b16 %v355
        %v1069 = vunpack.c.h.b16 %v355
        %v1070 = vunpack.c.l.b16 %v356
        %v1071 = vunpack.c.h.b16 %v356
        %v1072 = vunpack.c.l.b16 %v357
        %v1073 = vunpack.c.h.b16 %v357
        %v1074 = vunpack.c.l.b16 %v358
        %v1075 = vunpack.c.h.b16 %v358
        %v1076 = vunpack.c.l.b16 %v359
        %v1077 = vunpack.c.h.b16 %v359
        %v1078 = vunpack.c.l.b16 %v360
        %v1079 = vunpack.c.h.b16 %v360
        %v1080 = vunpack.c.l.b16 %v361
        %v1081 = vunpack.c.h.b16 %v361
        %v1082 = vunpack.c.l.b16 %v362
        %v1083 = vunpack.c.h.b16 %v362
        %v1084 = vunpack.c.l.b16 %v363
        %v1085 = vunpack.c.h.b16 %v363
        %v1086 = vunpack.c.l.b16 %v364
        %v1087 = vunpack.c.h.b16 %v364
        %v1088 = vunpack.c.l.b16 %v365
        %v1089 = vunpack.c.h.b16 %v365
        %v1090 = vunpack.c.l.b16 %v366
        %v1091 = vunpack.c.h.b16 %v366
        %v1092 = vunpack.c.l.b16 %v367
        %v1093 = vunpack.c.h.b16 %v367
        %v1094 = vunpack.c.l.b16 %v368
        %v1095 = vunpack.c.h.b16 %v368
        %v1096 = vunpack.c.l.b16 %v369
        %v1097 = vunpack.c.h.b16 %v369
        %v1098 = vunpack.c.l.b16 %v370
        %v1099 = vunpack.c.h.b16 %v370
        %v1100 = vunpack.c.l.b16 %v371
        %v1101 = vunpack.c.h.b16 %v371
        %v1102 = vunpack.c.l.b16 %v372
        %v1103 = vunpack.c.h.b16 %v372
        %v1104 = vunpack.c.l.b16 %v373
        %v1105 = vunpack.c.h.b16 %v373
        %v1106 = vunpack.c.l.b16 %v374
        %v1107 = vunpack.c.h.b16 %v374
        %v1108 = vunpack.c.l.b16 %v375
        %v1109 = vunpack.c.h.b16 %v375
        %v1110 = vunpack.c.l.b16 %v376
        %v1111 = vunpack.c.h.b16 %v376
        %v1112 = vunpack.c.l.b16 %v377
        %v1113 = vunpack.c.h.b16 %v377
        %v1114 = vunpack.c.l.b16 %v378
        %v1115 = vunpack.c.h.b16 %v378
        %v1116 = vunpack.c.l.b16 %v379
        %v1117 = vunpack.c.h.b16 %v379
        %v1118 = vunpack.c.l.b16 %v380
        %v1119 = vunpack.c.h.b16 %v380
        %v1120 = vunpack.c.l.b16 %v381
        %v1121 = vunpack.c.h.b16 %v381
        %v1122 = vunpack.c.l.b16 %v382
        %v1123 = vunpack.c.h.b16 %v382
        %v1124 = vunpack.c.l.b16 %v383
        %v1125 = vunpack.c.h.b16 %v383
        %v1126 = vunpack.c.l.b16 %v384
        %v1127 = vunpack.c.h.b16 %v384
        %v1128 = vunpack.c.l.b16 %v385
        %v1129 = vunpack.c.h.b16 %v385
        %v1130 = vunpack.c.l.b16 %v386
        %v1131 = vunpack.c.h.b16 %v386
        %v1132 = vunpack.c.l.b16 %v387
        %v1133 = vunpack.c.h.b16 %v387
        %v1134 = vunpack.c.l.b16 %v388
        %v1135 = vunpack.c.h.b16 %v388
        %v1136 = vunpack.c.l.b16 %v389
        %v1137 = vunpack.c.h.b16 %v389
        %v1138 = vunpack.c.l.b16 %v390
        %v1139 = vunpack.c.h.b16 %v390
        %v1140 = vunpack.c.l.b16 %v391
        %v1141 = vunpack.c.h.b16 %v391
        %v1142 = vunpack.c.l.b16 %v392
        %v1143 = vunpack.c.h.b16 %v392
        %v1144 = vunpack.c.l.b16 %v393
        %v1145 = vunpack.c.h.b16 %v393
        %v1146 = vunpack.c.l.b16 %v394
        %v1147 = vunpack.c.h.b16 %v394
        %v1148 = vunpack.c.l.b16 %v395
        %v1149 = vunpack.c.h.b16 %v395
        %v1150 = vunpack.c.l.b16 %v396
        %v1151 = vunpack.c.h.b16 %v396
        %v1152 = vunpack.c.l.b16 %v397
        %v1153 = vunpack.c.h.b16 %v397
        %v1154 = vunpack.c.l.b16 %v398
        %v1155 = vunpack.c.h.b16 %v398
        %v1156 = vunpack.c.l.b16 %v399
        %v1157 = vunpack.c.h.b16 %v399
        %v1158 = vunpack.c.l.b16 %v400
        %v1159 = vunpack.c.h.b16 %v400
        %v1160 = vunpack.c.l.b16 %v401
        %v1161 = vunpack.c.h.b16 %v401
        %v1162 = vunpack.c.l.b16 %v402
        %v1163 = vunpack.c.h.b16 %v402
        %v1164 = vunpack.c.l.b16 %v403
        %v1165 = vunpack.c.h.b16 %v403
        %v1166 = vunpack.c.l.b16 %v404
        %v1167 = vunpack.c.h.b16 %v404
        %v1168 = vunpack.c.l.b16 %v405
        %v1169 = vunpack.c.h.b16 %v405
        %v1170 = vunpack.c.l.b16 %v406
        %v1171 = vunpack.c.h.b16 %v406
        %v1172 = vunpack.c.l.b16 %v407
        %v1173 = vunpack.c.h.b16 %v407
        %v1174 = vunpack.c.l.b16 %v408
        %v1175 = vunpack.c.h.b16 %v408
        %v1176 = vunpack.c.l.b16 %v409
        %v1177 = vunpack.c.h.b16 %v409
        %v1178 = vunpack.c.l.b16 %v410
        %v1179 = vunpack.c.h.b16 %v410
        %v1180 = vunpack.c.l.b16 %v411
        %v1181 = vunpack.c.h.b16 %v411
        %v1182 = vunpack.c.l.b16 %v412
        %v1183 = vunpack.c.h.b16 %v412
        %v1184 = vunpack.c.l.b16 %v413
        %v1185 = vunpack.c.h.b16 %v413
        %v1186 = vunpack.c.l.b16 %v414
        %v1187 = vunpack.c.h.b16 %v414
        %v1188 = vunpack.c.l.b16 %v415
        %v1189 = vunpack.c.h.b16 %v415
        %v1190 = vunpack.c.l.b16 %v416
        %v1191 = vunpack.c.h.b16 %v416
        %v1192 = vunpack.c.l.b16 %v417
        %v1193 = vunpack.c.h.b16 %v417
        %v1194 = vunpack.c.l.b16 %v418
        %v1195 = vunpack.c.h.b16 %v418
        %v1196 = vunpack.c.l.b16 %v419
        %v1197 = vunpack.c.h.b16 %v419
        %v1198 = vunpack.c.l.b16 %v420
        %v1199 = vunpack.c.h.b16 %v420
        %v1200 = vunpack.c.l.b16 %v421
        %v1201 = vunpack.c.h.b16 %v421
        %v1202 = vunpack.c.l.b16 %v422
        %v1203 = vunpack.c.h.b16 %v422
        %v1204 = vunpack.c.l.b16 %v423
        %v1205 = vunpack.c.h.b16 %v423
        %v1206 = vunpack.c.l.b16 %v424
        %v1207 = vunpack.c.h.b16 %v424
        %v1208 = vunpack.c.l.b16 %v425
        %v1209 = vunpack.c.h.b16 %v425
        %v1210 = vunpack.c.l.b16 %v426
        %v1211 = vunpack.c.h.b16 %v426
        %v1212 = vunpack.c.l.b16 %v427
        %v1213 = vunpack.c.h.b16 %v427
        %v1214 = vunpack.c.l.b16 %v428
        %v1215 = vunpack.c.h.b16 %v428
        %v1216 = vunpack.c.l.b16 %v429
        %v1217 = vunpack.c.h.b16 %v429
        %v1218 = vunpack.c.l.b16 %v430
        %v1219 = vunpack.c.h.b16 %v430
        %v1220 = vunpack.c.l.b16 %v431
        %v1221 = vunpack.c.h.b16 %v431
        %v1222 = vunpack.c.l.b16 %v432
        %v1223 = vunpack.c.h.b16 %v432
        %v1224 = vunpack.c.l.b16 %v433
        %v1225 = vunpack.c.h.b16 %v433
        %v1226 = vunpack.c.l.b16 %v434
        %v1227 = vunpack.c.h.b16 %v434
        %v1228 = vunpack.c.l.b16 %v435
        %v1229 = vunpack.c.h.b16 %v435
        %v1230 = vunpack.c.l.b16 %v436
        %v1231 = vunpack.c.h.b16 %v436
        %v1232 = vunpack.c.l.b16 %v437
        %v1233 = vunpack.c.h.b16 %v437
        %v1234 = vunpack.c.l.b16 %v438
        %v1235 = vunpack.c.h.b16 %v438
        %v1236 = vunpack.c.l.b16 %v439
        %v1237 = vunpack.c.h.b16 %v439
        %v1238 = vunpack.c.l.b16 %v440
        %v1239 = vunpack.c.h.b16 %v440
        %v1240 = vunpack.c.l.b16 %v441
        %v1241 = vunpack.c.h.b16 %v441
        %v1242 = vunpack.c.l.b16 %v442
        %v1243 = vunpack.c.h.b16 %v442
        %v1244 = vunpack.c.l.b16 %v443
        %v1245 = vunpack.c.h.b16 %v443
        %v1246 = vunpack.c.l.b16 %v444
        %v1247 = vunpack.c.h.b16 %v444
        %v1248 = vunpack.c.l.b16 %v445
        %v1249 = vunpack.c.h.b16 %v445
        %v1250 = vunpack.c.l.b16 %v446
        %v1251 = vunpack.c.h.b16 %v446
        %v1252 = vunpack.c.l.b16 %v447
        %v1253 = vunpack.c.h.b16 %v447
        %v1254 = vunpack.c.l.b16 %v448
        %v1255 = vunpack.c.h.b16 %v448
        %v1256 = vunpack.c.l.b16 %v449
        %v1257 = vunpack.c.h.b16 %v449
        %v1258 = vunpack.c.l.b16 %v450
        %v1259 = vunpack.c.h.b16 %v450
        %v1260 = vunpack.c.l.b16 %v451
        %v1261 = vunpack.c.h.b16 %v451
        %v1262 = vunpack.c.l.b16 %v452
        %v1263 = vunpack.c.h.b16 %v452
        %v1264 = vunpack.c.l.b16 %v453
        %v1265 = vunpack.c.h.b16 %v453
        %v1266 = vunpack.c.l.b16 %v454
        %v1267 = vunpack.c.h.b16 %v454
        %v1268 = vunpack.c.l.b16 %v455
        %v1269 = vunpack.c.h.b16 %v455
        %v1270 = vunpack.c.l.b16 %v456
        %v1271 = vunpack.c.h.b16 %v456
        %v1272 = vunpack.c.l.b16 %v457
        %v1273 = vunpack.c.h.b16 %v457
        %v1274 = vunpack.c.l.b16 %v458
        %v1275 = vunpack.c.h.b16 %v458
        %v1276 = vunpack.c.l.b16 %v459
        %v1277 = vunpack.c.h.b16 %v459
        %v1278 = vunpack.c.l.b16 %v460
        %v1279 = vunpack.c.h.b16 %v460
        %v1280 = vunpack.c.l.b16 %v461
        %v1281 = vunpack.c.h.b16 %v461
        %v1282 = vunpack.c.l.b16 %v462
        %v1283 = vunpack.c.h.b16 %v462
        %v1284 = vunpack.c.l.b16 %v463
        %v1285 = vunpack.c.h.b16 %v463
        %v1286 = vunpack.c.l.b16 %v464
        %v1287 = vunpack.c.h.b16 %v464
        %v1288 = vunpack.c.l.b16 %v465
        %v1289 = vunpack.c.h.b16 %v465
        %v1290 = vunpack.c.l.b16 %v466
        %v1291 = vunpack.c.h.b16 %v466
        %v1292 = vunpack.c.l.b16 %v467
        %v1293 = vunpack.c.h.b16 %v467
        %v1294 = vunpack.c.l.b16 %v468
        %v1295 = vunpack.c.h.b16 %v468
        %v1296 = vunpack.c.l.b16 %v469
        %v1297 = vunpack.c.h.b16 %v469
        %v1298 = vunpack.c.l.b16 %v470
        %v1299 = vunpack.c.h.b16 %v470
        %v1300 = vunpack.c.l.b16 %v471
        %v1301 = vunpack.c.h.b16 %v471
        %v1302 = vunpack.c.l.b16 %v472
        %v1303 = vunpack.c.h.b16 %v472
        %v1304 = vunpack.c.l.b16 %v473
        %v1305 = vunpack.c.h.b16 %v473
        %v1306 = vunpack.c.l.b16 %v474
        %v1307 = vunpack.c.h.b16 %v474
        %v1308 = vunpack.c.l.b16 %v475
        %v1309 = vunpack.c.h.b16 %v475
        %v1310 = vunpack.c.l.b16 %v476
        %v1311 = vunpack.c.h.b16 %v476
        %v1312 = vunpack.c.l.b16 %v477
        %v1313 = vunpack.c.h.b16 %v477
        %v1314 = vunpack.c.l.b16 %v478
        %v1315 = vunpack.c.h.b16 %v478
        %v1316 = vunpack.c.l.b16 %v479
        %v1317 = vunpack.c.h.b16 %v479
        %v1318 = vunpack.c.l.b16 %v480
        %v1319 = vunpack.c.h.b16 %v480
        %v1320 = vunpack.c.l.b16 %v481
        %v1321 = vunpack.c.h.b16 %v481
        %v1322 = vunpack.c.l.b16 %v482
        %v1323 = vunpack.c.h.b16 %v482
        %v1324 = vunpack.c.l.b16 %v483
        %v1325 = vunpack.c.h.b16 %v483
        %v1326 = vunpack.c.l.b16 %v484
        %v1327 = vunpack.c.h.b16 %v484
        %v1328 = vunpack.c.l.b16 %v485
        %v1329 = vunpack.c.h.b16 %v485
        %v1330 = vunpack.c.l.b16 %v486
        %v1331 = vunpack.c.h.b16 %v486
        %v1332 = vunpack.c.l.b16 %v487
        %v1333 = vunpack.c.h.b16 %v487
        %v1334 = vunpack.c.l.b16 %v488
        %v1335 = vunpack.c.h.b16 %v488
        %v1336 = vunpack.c.l.b16 %v489
        %v1337 = vunpack.c.h.b16 %v489
        %v1338 = vunpack.c.l.b16 %v490
        %v1339 = vunpack.c.h.b16 %v490
        %v1340 = vunpack.c.l.b16 %v491
        %v1341 = vunpack.c.h.b16 %v491
        %v1342 = vunpack.c.l.b16 %v492
        %v1343 = vunpack.c.h.b16 %v492
        %v1344 = vunpack.c.l.b16 %v493
        %v1345 = vunpack.c.h.b16 %v493
        %v1346 = vunpack.c.l.b16 %v494
        %v1347 = vunpack.c.h.b16 %v494
        %v1348 = vunpack.c.l.b16 %v495
        %v1349 = vunpack.c.h.b16 %v495
        %v1350 = vunpack.c.l.b16 %v496
        %v1351 = vunpack.c.h.b16 %v496
        %v1352 = vunpack.c.l.b16 %v497
        %v1353 = vunpack.c.h.b16 %v497
        %v1354 = vunpack.c.l.b16 %v498
        %v1355 = vunpack.c.h.b16 %v498
        %v1356 = vunpack.c.l.b16 %v499
        %v1357 = vunpack.c.h.b16 %v499
        %v1358 = vunpack.c.l.b16 %v500
        %v1359 = vunpack.c.h.b16 %v500
        %v1360 = vunpack.c.l.b16 %v501
        %v1361 = vunpack.c.h.b16 %v501
        %v1362 = vunpack.c.l.b16 %v502
        %v1363 = vunpack.c.h.b16 %v502
        %v1364 = vunpack.c.l.b16 %v503
        %v1365 = vunpack.c.h.b16 %v503
        %v1366 = vunpack.c.l.b16 %v504
        %v1367 = vunpack.c.h.b16 %v504
        %v1368 = vunpack.c.l.b16 %v505
        %v1369 = vunpack.c.h.b16 %v505
        %v1370 = vunpack.c.l.b16 %v506
        %v1371 = vunpack.c.h.b16 %v506
        %v1372 = vunpack.c.l.b16 %v507
        %v1373 = vunpack.c.h.b16 %v507
        %v1374 = vunpack.c.l.b16 %v508
        %v1375 = vunpack.c.h.b16 %v508
        %v1376 = vunpack.c.l.b16 %v509
        %v1377 = vunpack.c.h.b16 %v509
        %v1378 = vunpack.c.l.b16 %v510
        %v1379 = vunpack.c.h.b16 %v510
        %v1380 = vunpack.c.l.b16 %v511
        %v1381 = vunpack.c.h.b16 %v511
        %v1382 = vunpack.c.l.b16 %v512
        %v1383 = vunpack.c.h.b16 %v512
        %v1384 = vunpack.c.l.b16 %v513
        %v1385 = vunpack.c.h.b16 %v513
        %v1386 = vunpack.c.l.b16 %v514
        %v1387 = vunpack.c.h.b16 %v514
        %v1388 = vunpack.c.l.b16 %v515
        %v1389 = vunpack.c.h.b16 %v515
        %v1390 = vunpack.c.l.b16 %v516
        %v1391 = vunpack.c.h.b16 %v516
        %v1392 = vunpack.c.l.b16 %v517
        %v1393 = vunpack.c.h.b16 %v517
        %v1394 = vunpack.c.l.b16 %v518
        %v1395 = vunpack.c.h.b16 %v518
        %v1396 = vunpack.c.l.b16 %v519
        %v1397 = vunpack.c.h.b16 %v519
        %v1398 = vpack.c.b16 %v828, %v822
        %v1399 = vpack.c.b16 %v829, %v823
        %v1400 = vpack.c.b16 %v830, %v824
        %v1401 = vpack.c.b16 %v831, %v825
        %v1402 = vpack.c.b16 %v832, %v826
        %v1403 = vpack.c.b16 %v833, %v827
        %v1404 = vpack.c.b16 %v840, %v834
        %v1405 = vpack.c.b16 %v841, %v835
        %v1406 = vpack.c.b16 %v842, %v836
        %v1407 = vpack.c.b16 %v843, %v837
        %v1408 = vpack.c.b16 %v844, %v838
        %v1409 = vpack.c.b16 %v845, %v839
        %v1410 = vpack.c.b16 %v852, %v846
        %v1411 = vpack.c.b16 %v853, %v847
        %v1412 = vpack.c.b16 %v854, %v848
        %v1413 = vpack.c.b16 %v855, %v849
        %v1414 = vpack.c.b16 %v856, %v850
        %v1415 = vpack.c.b16 %v857, %v851
        %v1416 = vpack.c.b16 %v864, %v858
        %v1417 = vpack.c.b16 %v865, %v859
        %v1418 = vpack.c.b16 %v866, %v860
        %v1419 = vpack.c.b16 %v867, %v861
        %v1420 = vpack.c.b16 %v868, %v862
        %v1421 = vpack.c.b16 %v869, %v863
        %v1422 = vpack.c.b16 %v876, %v870
        %v1423 = vpack.c.b16 %v877, %v871
        %v1424 = vpack.c.b16 %v878, %v872
        %v1425 = vpack.c.b16 %v879, %v873
        %v1426 = vpack.c.b16 %v880, %v874
        %v1427 = vpack.c.b16 %v881, %v875
        %v1428 = vpack.c.b16 %v888, %v882
        %v1429 = vpack.c.b16 %v889, %v883
        %v1430 = vpack.c.b16 %v890, %v884
        %v1431 = vpack.c.b16 %v891, %v885
        %v1432 = vpack.c.b16 %v892, %v886
        %v1433 = vpack.c.b16 %v893, %v887
        %v1434 = vpack.c.b16 %v900, %v894
        %v1435 = vpack.c.b16 %v901, %v895
        %v1436 = vpack.c.b16 %v902, %v896
        %v1437 = vpack.c.b16 %v903, %v897
        %v1438 = vpack.c.b16 %v904, %v898
        %v1439 = vpack.c.b16 %v905, %v899
        %v1440 = vpack.c.b16 %v912, %v906
        %v1441 = vpack.c.b16 %v913, %v907
        %v1442 = vpack.c.b16 %v914, %v908
        %v1443 = vpack.c.b16 %v915, %v909
        %v1444 = vpack.c.b16 %v916, %v910
        %v1445 = vpack.c.b16 %v917, %v911
        %v1446 = vpack.c.b16 %v924, %v918
        %v1447 = vpack.c.b16 %v925, %v919
        %v1448 = vpack.c.b16 %v926, %v920
        %v1449 = vpack.c.b16 %v927, %v921
        %v1450 = vpack.c.b16 %v928, %v922
        %v1451 = vpack.c.b16 %v929, %v923
        %v1452 = vpack.c.b16 %v936, %v930
        %v1453 = vpack.c.b16 %v937, %v931
        %v1454 = vpack.c.b16 %v938, %v932
        %v1455 = vpack.c.b16 %v939, %v933
        %v1456 = vpack.c.b16 %v940, %v934
        %v1457 = vpack.c.b16 %v941, %v935
        %v1458 = vpack.c.b16 %v948, %v942
        %v1459 = vpack.c.b16 %v949, %v943
        %v1460 = vpack.c.b16 %v950, %v944
        %v1461 = vpack.c.b16 %v951, %v945
        %v1462 = vpack.c.b16 %v952, %v946
        %v1463 = vpack.c.b16 %v953, %v947
        %v1464 = vpack.c.b16 %v960, %v954
        %v1465 = vpack.c.b16 %v961, %v955
        %v1466 = vpack.c.b16 %v962, %v956
        %v1467 = vpack.c.b16 %v963, %v957
        %v1468 = vpack.c.b16 %v964, %v958
        %v1469 = vpack.c.b16 %v965, %v959
        %v1470 = vpack.c.b16 %v972, %v966
        %v1471 = vpack.c.b16 %v973, %v967
        %v1472 = vpack.c.b16 %v974, %v968
        %v1473 = vpack.c.b16 %v975, %v969
        %v1474 = vpack.c.b16 %v976, %v970
        %v1475 = vpack.c.b16 %v977, %v971
        %v1476 = vpack.c.b16 %v984, %v978
        %v1477 = vpack.c.b16 %v985, %v979
        %v1478 = vpack.c.b16 %v986, %v980
        %v1479 = vpack.c.b16 %v987, %v981
        %v1480 = vpack.c.b16 %v988, %v982
        %v1481 = vpack.c.b16 %v989, %v983
        %v1482 = vpack.c.b16 %v996, %v990
        %v1483 = vpack.c.b16 %v997, %v991
        %v1484 = vpack.c.b16 %v998, %v992
        %v1485 = vpack.c.b16 %v999, %v993
        %v1486 = vpack.c.b16 %v1000, %v994
        %v1487 = vpack.c.b16 %v1001, %v995
        %v1488 = vpack.c.b16 %v1008, %v1002
        %v1489 = vpack.c.b16 %v1009, %v1003
        %v1490 = vpack.c.b16 %v1010, %v1004
        %v1491 = vpack.c.b16 %v1011, %v1005
        %v1492 = vpack.c.b16 %v1012, %v1006
        %v1493 = vpack.c.b16 %v1013, %v1007
        %v1494 = vpack.c.b16 %v1020, %v1014
        %v1495 = vpack.c.b16 %v1021, %v1015
        %v1496 = vpack.c.b16 %v1022, %v1016
        %v1497 = vpack.c.b16 %v1023, %v1017
        %v1498 = vpack.c.b16 %v1024, %v1018
        %v1499 = vpack.c.b16 %v1025, %v1019
        %v1500 = vpack.c.b16 %v1032, %v1026
        %v1501 = vpack.c.b16 %v1033, %v1027
        %v1502 = vpack.c.b16 %v1034, %v1028
        %v1503 = vpack.c.b16 %v1035, %v1029
        %v1504 = vpack.c.b16 %v1036, %v1030
        %v1505 = vpack.c.b16 %v1037, %v1031
        %v1506 = vpack.c.b16 %v1044, %v1038
        %v1507 = vpack.c.b16 %v1045, %v1039
        %v1508 = vpack.c.b16 %v1046, %v1040
        %v1509 = vpack.c.b16 %v1047, %v1041
        %v1510 = vpack.c.b16 %v1048, %v1042
        %v1511 = vpack.c.b16 %v1049, %v1043
        %v1512 = vpack.c.b16 %v1056, %v1050
        %v1513 = vpack.c.b16 %v1057, %v1051
        %v1514 = vpack.c.b16 %v1058, %v1052
        %v1515 = vpack.c.b16 %v1059, %v1053
        %v1516 = vpack.c.b16 %v1060, %v1054
        %v1517 = vpack.c.b16 %v1061, %v1055
        %v1518 = vpack.c.b16 %v1068, %v1062
        %v1519 = vpack.c.b16 %v1069, %v1063
        %v1520 = vpack.c.b16 %v1070, %v1064
        %v1521 = vpack.c.b16 %v1071, %v1065
        %v1522 = vpack.c.b16 %v1072, %v1066
        %v1523 = vpack.c.b16 %v1073, %v1067
        %v1524 = vpack.c.b16 %v1080, %v1074
        %v1525 = vpack.c.b16 %v1081, %v1075
        %v1526 = vpack.c.b16 %v1082, %v1076
        %v1527 = vpack.c.b16 %v1083, %v1077
        %v1528 = vpack.c.b16 %v1084, %v1078
        %v1529 = vpack.c.b16 %v1085, %v1079
        %v1530 = vpack.c.b16 %v1092, %v1086
        %v1531 = vpack.c.b16 %v1093, %v1087
        %v1532 = vpack.c.b16 %v1094, %v1088
        %v1533 = vpack.c.b16 %v1095, %v1089
        %v1534 = vpack.c.b16 %v1096, %v1090
        %v1535 = vpack.c.b16 %v1097, %v1091
        %v1536 = vpack.c.b16 %v1104, %v1098
        %v1537 = vpack.c.b16 %v1105, %v1099
        %v1538 = vpack.c.b16 %v1106, %v1100
        %v1539 = vpack.c.b16 %v1107, %v1101
        %v1540 = vpack.c.b16 %v1108, %v1102
        %v1541 = vpack.c.b16 %v1109, %v1103
        %v1542 = vpack.c.b16 %v1116, %v1110
        %v1543 = vpack.c.b16 %v1117, %v1111
        %v1544 = vpack.c.b16 %v1118, %v1112
        %v1545 = vpack.c.b16 %v1119, %v1113
        %v1546 = vpack.c.b16 %v1120, %v1114
        %v1547 = vpack.c.b16 %v1121, %v1115
        %v1548 = vpack.c.b16 %v1128, %v1122
        %v1549 = vpack.c.b16 %v1129, %v1123
        %v1550 = vpack.c.b16 %v1130, %v1124
        %v1551 = vpack.c.b16 %v1131, %v1125
        %v1552 = vpack.c.b16 %v1132, %v1126
        %v1553 = vpack.c.b16 %v1133, %v1127
        %v1554 = vpack.c.b16 %v1140, %v1134
        %v1555 = vpack.c.b16 %v1141, %v1135
        %v1556 = vpack.c.b16 %v1142, %v1136
        %v1557 = vpack.c.b16 %v1143, %v1137
        %v1558 = vpack.c.b16 %v1144, %v1138
        %v1559 = vpack.c.b16 %v1145, %v1139
        %v1560 = vpack.c.b16 %v1152, %v1146
        %v1561 = vpack.c.b16 %v1153, %v1147
        %v1562 = vpack.c.b16 %v1154, %v1148
        %v1563 = vpack.c.b16 %v1155, %v1149
        %v1564 = vpack.c.b16 %v1156, %v1150
        %v1565 = vpack.c.b16 %v1157, %v1151
        %v1566 = vpack.c.b16 %v1164, %v1158
        %v1567 = vpack.c.b16 %v1165, %v1159
        %v1568 = vpack.c.b16 %v1166, %v1160
        %v1569 = vpack.c.b16 %v1167, %v1161
        %v1570 = vpack.c.b16 %v1168, %v1162
        %v1571 = vpack.c.b16 %v1169, %v1163
        %v1572 = vpack.c.b16 %v1176, %v1170
        %v1573 = vpack.c.b16 %v1177, %v1171
        %v1574 = vpack.c.b16 %v1178, %v1172
        %v1575 = vpack.c.b16 %v1179, %v1173
        %v1576 = vpack.c.b16 %v1180, %v1174
        %v1577 = vpack.c.b16 %v1181, %v1175
        %v1578 = vpack.c.b16 %v1188, %v1182
        %v1579 = vpack.c.b16 %v1189, %v1183
        %v1580 = vpack.c.b16 %v1190, %v1184
        %v1581 = vpack.c.b16 %v1191, %v1185
        %v1582 = vpack.c.b16 %v1192, %v1186
        %v1583 = vpack.c.b16 %v1193, %v1187
        %v1584 = vpack.c.b16 %v1200, %v1194
        %v1585 = vpack.c.b16 %v1201, %v1195
        %v1586 = vpack.c.b16 %v1202, %v1196
        %v1587 = vpack.c.b16 %v1203, %v1197
        %v1588 = vpack.c.b16 %v1204, %v1198
        %v1589 = vpack.c.b16 %v1205, %v1199
        %v1590 = vpack.c.b16 %v1212, %v1206
        %v1591 = vpack.c.b16 %v1213, %v1207
        %v1592 = vpack.c.b16 %v1214, %v1208
        %v1593 = vpack.c.b16 %v1215, %v1209
        %v1594 = vpack.c.b16 %v1216, %v1210
        %v1595 = vpack.c.b16 %v1217, %v1211
        %v1596 = vpack.c.b16 %v1224, %v1218
        %v1597 = vpack.c.b16 %v1225, %v1219
        %v1598 = vpack.c.b16 %v1226, %v1220
        %v1599 = vpack.c.b16 %v1227, %v1221
        %v1600 = vpack.c.b16 %v1228, %v1222
        %v1601 = vpack.c.b16 %v1229, %v1223
        %v1602 = vpack.c.b16 %v1236, %v1230
        %v1603 = vpack.c.b16 %v1237, %v1231
        %v1604 = vpack.c.b16 %v1238, %v1232
        %v1605 = vpack.c.b16 %v1239, %v1233
        %v1606 = vpack.c.b16 %v1240, %v1234
        %v1607 = vpack.c.b16 %v1241, %v1235
        %v1608 = vpack.c.b16 %v1248, %v1242
        %v1609 = vpack.c.b16 %v1249, %v1243
        %v1610 = vpack.c.b16 %v1250, %v1244
        %v1611 = vpack.c.b16 %v1251, %v1245
        %v1612 = vpack.c.b16 %v1252, %v1246
        %v1613 = vpack.c.b16 %v1253, %v1247
        %v1614 = vpack.c.b16 %v1260, %v1254
        %v1615 = vpack.c.b16 %v1261, %v1255
        %v1616 = vpack.c.b16 %v1262, %v1256
        %v1617 = vpack.c.b16 %v1263, %v1257
        %v1618 = vpack.c.b16 %v1264, %v1258
        %v1619 = vpack.c.b16 %v1265, %v1259
        %v1620 = vpack.c.b16 %v1272, %v1266
        %v1621 = vpack.c.b16 %v1273, %v1267
        %v1622 = vpack.c.b16 %v1274, %v1268
        %v1623 = vpack.c.b16 %v1275, %v1269
        %v1624 = vpack.c.b16 %v1276, %v1270
        %v1625 = vpack.c.b16 %v1277, %v1271
        %v1626 = vpack.c.b16 %v1284, %v1278
        %v1627 = vpack.c.b16 %v1285, %v1279
        %v1628 = vpack.c.b16 %v1286, %v1280
        %v1629 = vpack.c.b16 %v1287, %v1281
        %v1630 = vpack.c.b16 %v1288, %v1282
        %v1631 = vpack.c.b16 %v1289, %v1283
        %v1632 = vpack.c.b16 %v1296, %v1290
        %v1633 = vpack.c.b16 %v1297, %v1291
        %v1634 = vpack.c.b16 %v1298, %v1292
        %v1635 = vpack.c.b16 %v1299, %v1293
        %v1636 = vpack.c.b16 %v1300, %v1294
        %v1637 = vpack.c.b16 %v1301, %v1295
        %v1638 = vpack.c.b16 %v1308, %v1302
        %v1639 = vpack.c.b16 %v1309, %v1303
        %v1640 = vpack.c.b16 %v1310, %v1304
        %v1641 = vpack.c.b16 %v1311, %v1305
        %v1642 = vpack.c.b16 %v1312, %v1306
        %v1643 = vpack.c.b16 %v1313, %v1307
        %v1644 = vpack.c.b16 %v1320, %v1314
        %v1645 = vpack.c.b16 %v1321, %v1315
        %v1646 = vpack.c.b16 %v1322, %v1316
        %v1647 = vpack.c.b16 %v1323, %v1317
        %v1648 = vpack.c.b16 %v1324, %v1318
        %v1649 = vpack.c.b16 %v1325, %v1319
        %v1650 = vpack.c.b16 %v1332, %v1326
        %v1651 = vpack.c.b16 %v1333, %v1327
        %v1652 = vpack.c.b16 %v1334, %v1328
        %v1653 = vpack.c.b16 %v1335, %v1329
        %v1654 = vpack.c.b16 %v1336, %v1330
        %v1655 = vpack.c.b16 %v1337, %v1331
        %v1656 = vpack.c.b16 %v1344, %v1338
        %v1657 = vpack.c.b16 %v1345, %v1339
        %v1658 = vpack.c.b16 %v1346, %v1340
        %v1659 = vpack.c.b16 %v1347, %v1341
        %v1660 = vpack.c.b16 %v1348, %v1342
        %v1661 = vpack.c.b16 %v1349, %v1343
        %v1662 = vpack.c.b16 %v1356, %v1350
        %v1663 = vpack.c.b16 %v1357, %v1351
        %v1664 = vpack.c.b16 %v1358, %v1352
        %v1665 = vpack.c.b16 %v1359, %v1353
        %v1666 = vpack.c.b16 %v1360, %v1354
        %v1667 = vpack.c.b16 %v1361, %v1355
        %v1668 = vpack.c.b16 %v1368, %v1362
        %v1669 = vpack.c.b16 %v1369, %v1363
        %v1670 = vpack.c.b16 %v1370, %v1364
        %v1671 = vpack.c.b16 %v1371, %v1365
        %v1672 = vpack.c.b16 %v1372, %v1366
        %v1673 = vpack.c.b16 %v1373, %v1367
        %v1674 = vpack.c.b16 %v1380, %v1374
        %v1675 = vpack.c.b16 %v1381, %v1375
        %v1676 = vpack.c.b16 %v1382, %v1376
        %v1677 = vpack.c.b16 %v1383, %v1377
        %v1678 = vpack.c.b16 %v1384, %v1378
        %v1679 = vpack.c.b16 %v1385, %v1379
        %v1680 = vpack.c.b16 %v1392, %v1386
        %v1681 = vpack.c.b16 %v1393, %v1387
        %v1682 = vpack.c.b16 %v1394, %v1388
        %v1683 = vpack.c.b16 %v1395, %v1389
        %v1684 = vpack.c.b16 %v1396, %v1390
        %v1685 = vpack.c.b16 %v1397, %v1391
        %1974 = vmatpush.bf16.msra.mxu0 %v1440
        %1975 = vmatpush.bf16.msra.mxu0 %v1434
        %1976 = vmatpush.bf16.msra.mxu0 %v1428
        %1977 = vmatpush.bf16.msra.mxu0 %v1422
        %1978 = vmatpush.bf16.msra.mxu0 %v1416
        %1979 = vmatpush.bf16.msra.mxu0 %v1410
        %1980 = vmatpush.bf16.msra.mxu0 %v1404
        %1981 = vmatpush.bf16.msra.mxu0 %v1398
        %1982 = vmatmul.bf16.gmra.mxu0 %v226
        %v1983 = vpop.f32.mrf.mxu0
        %v1984 = vadd.f32 %v522, %v1983
        %v1985 = vpop.f32.mrf.mxu0
        %1986 = vdwg.mxu0
        %1987 = vmatpush.bf16.msra.mxu0 %v1488
        %1988 = vmatpush.bf16.msra.mxu0 %v1482
        %1989 = vmatpush.bf16.msra.mxu0 %v1476
        %1990 = vmatpush.bf16.msra.mxu0 %v1470
        %1991 = vmatpush.bf16.msra.mxu0 %v1464
        %1992 = vmatpush.bf16.msra.mxu0 %v1458
        %1993 = vmatpush.bf16.msra.mxu0 %v1452
        %1994 = vmatpush.bf16.msra.mxu0 %v1446
        %1995 = vmatmul.bf16.gmra.mxu0 %v227
        %v1996 = vpop.f32.mrf.mxu0
        %v1997 = vadd.f32 %v1984, %v1996
        %v1998 = vpop.f32.mrf.mxu0
        %1999 = vdwg.mxu0
        %2000 = vmatpush.bf16.msra.mxu0 %v1536
        %2001 = vmatpush.bf16.msra.mxu0 %v1530
        %2002 = vmatpush.bf16.msra.mxu0 %v1524
        %2003 = vmatpush.bf16.msra.mxu0 %v1518
        %2004 = vmatpush.bf16.msra.mxu0 %v1512
        %2005 = vmatpush.bf16.msra.mxu0 %v1506
        %2006 = vmatpush.bf16.msra.mxu0 %v1500
        %2007 = vmatpush.bf16.msra.mxu0 %v1494
        %2008 = vmatmul.bf16.gmra.mxu0 %v228
        %v2009 = vpop.f32.mrf.mxu0
        %v2010 = vadd.f32 %v1997, %v2009
        %v2011 = vpop.f32.mrf.mxu0
        %2012 = vdwg.mxu0
        %2013 = vmatpush.bf16.msra.mxu0 %v1584
        %2014 = vmatpush.bf16.msra.mxu0 %v1578
        %2015 = vmatpush.bf16.msra.mxu0 %v1572
        %2016 = vmatpush.bf16.msra.mxu0 %v1566
        %2017 = vmatpush.bf16.msra.mxu0 %v1560
        %2018 = vmatpush.bf16.msra.mxu0 %v1554
        %2019 = vmatpush.bf16.msra.mxu0 %v1548
        %2020 = vmatpush.bf16.msra.mxu0 %v1542
        %2021 = vmatmul.bf16.gmra.mxu0 %v229
        %v2022 = vpop.f32.mrf.mxu0
        %v2023 = vadd.f32 %v2010, %v2022
        %v2024 = vpop.f32.mrf.mxu0
        %2025 = vdwg.mxu0
        %2026 = vmatpush.bf16.msra.mxu0 %v1632
        %2027 = vmatpush.bf16.msra.mxu0 %v1626
        %2028 = vmatpush.bf16.msra.mxu0 %v1620
        %2029 = vmatpush.bf16.msra.mxu0 %v1614
        %2030 = vmatpush.bf16.msra.mxu0 %v1608
        %2031 = vmatpush.bf16.msra.mxu0 %v1602
        %2032 = vmatpush.bf16.msra.mxu0 %v1596
        %2033 = vmatpush.bf16.msra.mxu0 %v1590
        %2034 = vmatmul.bf16.gmra.mxu0 %v230
        %v2035 = vpop.f32.mrf.mxu0
        %v2036 = vadd.f32 %v2023, %v2035
        %v2037 = vpop.f32.mrf.mxu0
        %2038 = vdwg.mxu0
        %2039 = vmatpush.bf16.msra.mxu0 %v1680
        %2040 = vmatpush.bf16.msra.mxu0 %v1674
        %2041 = vmatpush.bf16.msra.mxu0 %v1668
        %2042 = vmatpush.bf16.msra.mxu0 %v1662
        %2043 = vmatpush.bf16.msra.mxu0 %v1656
        %2044 = vmatpush.bf16.msra.mxu0 %v1650
        %2045 = vmatpush.bf16.msra.mxu0 %v1644
        %2046 = vmatpush.bf16.msra.mxu0 %v1638
        %2047 = vmatmul.bf16.gmra.mxu0 %v231
        %v2048 = vpop.f32.mrf.mxu0
        %v2049 = vadd.f32 %v2036, %v2048
        %v2050 = vpop.f32.mrf.mxu0
        %2051 = vdwg.mxu0
        %2052 = vmatpush.bf16.msra.mxu0 %v1441
        %2053 = vmatpush.bf16.msra.mxu0 %v1435
        %2054 = vmatpush.bf16.msra.mxu0 %v1429
        %2055 = vmatpush.bf16.msra.mxu0 %v1423
        %2056 = vmatpush.bf16.msra.mxu0 %v1417
        %2057 = vmatpush.bf16.msra.mxu0 %v1411
        %2058 = vmatpush.bf16.msra.mxu0 %v1405
        %2059 = vmatpush.bf16.msra.mxu0 %v1399
        %2060 = vmatmul.bf16.gmra.mxu0 %v226
        %v2061 = vpop.f32.mrf.mxu0
        %v2062 = vadd.f32 %v523, %v2061
        %v2063 = vpop.f32.mrf.mxu0
        %2064 = vdwg.mxu0
        %2065 = vmatpush.bf16.msra.mxu0 %v1489
        %2066 = vmatpush.bf16.msra.mxu0 %v1483
        %2067 = vmatpush.bf16.msra.mxu0 %v1477
        %2068 = vmatpush.bf16.msra.mxu0 %v1471
        %2069 = vmatpush.bf16.msra.mxu0 %v1465
        %2070 = vmatpush.bf16.msra.mxu0 %v1459
        %2071 = vmatpush.bf16.msra.mxu0 %v1453
        %2072 = vmatpush.bf16.msra.mxu0 %v1447
        %2073 = vmatmul.bf16.gmra.mxu0 %v227
        %v2074 = vpop.f32.mrf.mxu0
        %v2075 = vadd.f32 %v2062, %v2074
        %v2076 = vpop.f32.mrf.mxu0
        %2077 = vdwg.mxu0
        %2078 = vmatpush.bf16.msra.mxu0 %v1537
        %2079 = vmatpush.bf16.msra.mxu0 %v1531
        %2080 = vmatpush.bf16.msra.mxu0 %v1525
        %2081 = vmatpush.bf16.msra.mxu0 %v1519
        %2082 = vmatpush.bf16.msra.mxu0 %v1513
        %2083 = vmatpush.bf16.msra.mxu0 %v1507
        %2084 = vmatpush.bf16.msra.mxu0 %v1501
        %2085 = vmatpush.bf16.msra.mxu0 %v1495
        %2086 = vmatmul.bf16.gmra.mxu0 %v228
        %v2087 = vpop.f32.mrf.mxu0
        %v2088 = vadd.f32 %v2075, %v2087
        %v2089 = vpop.f32.mrf.mxu0
        %2090 = vdwg.mxu0
        %2091 = vmatpush.bf16.msra.mxu0 %v1585
        %2092 = vmatpush.bf16.msra.mxu0 %v1579
        %2093 = vmatpush.bf16.msra.mxu0 %v1573
        %2094 = vmatpush.bf16.msra.mxu0 %v1567
        %2095 = vmatpush.bf16.msra.mxu0 %v1561
        %2096 = vmatpush.bf16.msra.mxu0 %v1555
        %2097 = vmatpush.bf16.msra.mxu0 %v1549
        %2098 = vmatpush.bf16.msra.mxu0 %v1543
        %2099 = vmatmul.bf16.gmra.mxu0 %v229
        %v2100 = vpop.f32.mrf.mxu0
        %v2101 = vadd.f32 %v2088, %v2100
        %v2102 = vpop.f32.mrf.mxu0
        %2103 = vdwg.mxu0
        %2104 = vmatpush.bf16.msra.mxu0 %v1633
        %2105 = vmatpush.bf16.msra.mxu0 %v1627
        %2106 = vmatpush.bf16.msra.mxu0 %v1621
        %2107 = vmatpush.bf16.msra.mxu0 %v1615
        %2108 = vmatpush.bf16.msra.mxu0 %v1609
        %2109 = vmatpush.bf16.msra.mxu0 %v1603
        %2110 = vmatpush.bf16.msra.mxu0 %v1597
        %2111 = vmatpush.bf16.msra.mxu0 %v1591
        %2112 = vmatmul.bf16.gmra.mxu0 %v230
        %v2113 = vpop.f32.mrf.mxu0
        %v2114 = vadd.f32 %v2101, %v2113
        %v2115 = vpop.f32.mrf.mxu0
        %2116 = vdwg.mxu0
        %2117 = vmatpush.bf16.msra.mxu0 %v1681
        %2118 = vmatpush.bf16.msra.mxu0 %v1675
        %2119 = vmatpush.bf16.msra.mxu0 %v1669
        %2120 = vmatpush.bf16.msra.mxu0 %v1663
        %2121 = vmatpush.bf16.msra.mxu0 %v1657
        %2122 = vmatpush.bf16.msra.mxu0 %v1651
        %2123 = vmatpush.bf16.msra.mxu0 %v1645
        %2124 = vmatpush.bf16.msra.mxu0 %v1639
        %2125 = vmatmul.bf16.gmra.mxu0 %v231
        %v2126 = vpop.f32.mrf.mxu0
        %v2127 = vadd.f32 %v2114, %v2126
        %v2128 = vpop.f32.mrf.mxu0
        %2129 = vdwg.mxu0
        %2130 = vmatpush.bf16.msra.mxu0 %v1442
        %2131 = vmatpush.bf16.msra.mxu0 %v1436
        %2132 = vmatpush.bf16.msra.mxu0 %v1430
        %2133 = vmatpush.bf16.msra.mxu0 %v1424
        %2134 = vmatpush.bf16.msra.mxu0 %v1418
        %2135 = vmatpush.bf16.msra.mxu0 %v1412
        %2136 = vmatpush.bf16.msra.mxu0 %v1406
        %2137 = vmatpush.bf16.msra.mxu0 %v1400
        %2138 = vmatmul.bf16.gmra.mxu0 %v226
        %v2139 = vpop.f32.mrf.mxu0
        %v2140 = vadd.f32 %v524, %v2139
        %v2141 = vpop.f32.mrf.mxu0
        %2142 = vdwg.mxu0
        %2143 = vmatpush.bf16.msra.mxu0 %v1490
        %2144 = vmatpush.bf16.msra.mxu0 %v1484
        %2145 = vmatpush.bf16.msra.mxu0 %v1478
        %2146 = vmatpush.bf16.msra.mxu0 %v1472
        %2147 = vmatpush.bf16.msra.mxu0 %v1466
        %2148 = vmatpush.bf16.msra.mxu0 %v1460
        %2149 = vmatpush.bf16.msra.mxu0 %v1454
        %2150 = vmatpush.bf16.msra.mxu0 %v1448
        %2151 = vmatmul.bf16.gmra.mxu0 %v227
        %v2152 = vpop.f32.mrf.mxu0
        %v2153 = vadd.f32 %v2140, %v2152
        %v2154 = vpop.f32.mrf.mxu0
        %2155 = vdwg.mxu0
        %2156 = vmatpush.bf16.msra.mxu0 %v1538
        %2157 = vmatpush.bf16.msra.mxu0 %v1532
        %2158 = vmatpush.bf16.msra.mxu0 %v1526
        %2159 = vmatpush.bf16.msra.mxu0 %v1520
        %2160 = vmatpush.bf16.msra.mxu0 %v1514
        %2161 = vmatpush.bf16.msra.mxu0 %v1508
        %2162 = vmatpush.bf16.msra.mxu0 %v1502
        %2163 = vmatpush.bf16.msra.mxu0 %v1496
        %2164 = vmatmul.bf16.gmra.mxu0 %v228
        %v2165 = vpop.f32.mrf.mxu0
        %v2166 = vadd.f32 %v2153, %v2165
        %v2167 = vpop.f32.mrf.mxu0
        %2168 = vdwg.mxu0
        %2169 = vmatpush.bf16.msra.mxu0 %v1586
        %2170 = vmatpush.bf16.msra.mxu0 %v1580
        %2171 = vmatpush.bf16.msra.mxu0 %v1574
        %2172 = vmatpush.bf16.msra.mxu0 %v1568
        %2173 = vmatpush.bf16.msra.mxu0 %v1562
        %2174 = vmatpush.bf16.msra.mxu0 %v1556
        %2175 = vmatpush.bf16.msra.mxu0 %v1550
        %2176 = vmatpush.bf16.msra.mxu0 %v1544
        %2177 = vmatmul.bf16.gmra.mxu0 %v229
        %v2178 = vpop.f32.mrf.mxu0
        %v2179 = vadd.f32 %v2166, %v2178
        %v2180 = vpop.f32.mrf.mxu0
        %2181 = vdwg.mxu0
        %2182 = vmatpush.bf16.msra.mxu0 %v1634
        %2183 = vmatpush.bf16.msra.mxu0 %v1628
        %2184 = vmatpush.bf16.msra.mxu0 %v1622
        %2185 = vmatpush.bf16.msra.mxu0 %v1616
        %2186 = vmatpush.bf16.msra.mxu0 %v1610
        %2187 = vmatpush.bf16.msra.mxu0 %v1604
        %2188 = vmatpush.bf16.msra.mxu0 %v1598
        %2189 = vmatpush.bf16.msra.mxu0 %v1592
        %2190 = vmatmul.bf16.gmra.mxu0 %v230
        %v2191 = vpop.f32.mrf.mxu0
        %v2192 = vadd.f32 %v2179, %v2191
        %v2193 = vpop.f32.mrf.mxu0
        %2194 = vdwg.mxu0
        %2195 = vmatpush.bf16.msra.mxu0 %v1682
        %2196 = vmatpush.bf16.msra.mxu0 %v1676
        %2197 = vmatpush.bf16.msra.mxu0 %v1670
        %2198 = vmatpush.bf16.msra.mxu0 %v1664
        %2199 = vmatpush.bf16.msra.mxu0 %v1658
        %2200 = vmatpush.bf16.msra.mxu0 %v1652
        %2201 = vmatpush.bf16.msra.mxu0 %v1646
        %2202 = vmatpush.bf16.msra.mxu0 %v1640
        %2203 = vmatmul.bf16.gmra.mxu0 %v231
        %v2204 = vpop.f32.mrf.mxu0
        %v2205 = vadd.f32 %v2192, %v2204
        %v2206 = vpop.f32.mrf.mxu0
        %2207 = vdwg.mxu0
        %2208 = vmatpush.bf16.msra.mxu0 %v1443
        %2209 = vmatpush.bf16.msra.mxu0 %v1437
        %2210 = vmatpush.bf16.msra.mxu0 %v1431
        %2211 = vmatpush.bf16.msra.mxu0 %v1425
        %2212 = vmatpush.bf16.msra.mxu0 %v1419
        %2213 = vmatpush.bf16.msra.mxu0 %v1413
        %2214 = vmatpush.bf16.msra.mxu0 %v1407
        %2215 = vmatpush.bf16.msra.mxu0 %v1401
        %2216 = vmatmul.bf16.gmra.mxu0 %v226
        %v2217 = vpop.f32.mrf.mxu0
        %v2218 = vadd.f32 %v525, %v2217
        %v2219 = vpop.f32.mrf.mxu0
        %2220 = vdwg.mxu0
        %2221 = vmatpush.bf16.msra.mxu0 %v1491
        %2222 = vmatpush.bf16.msra.mxu0 %v1485
        %2223 = vmatpush.bf16.msra.mxu0 %v1479
        %2224 = vmatpush.bf16.msra.mxu0 %v1473
        %2225 = vmatpush.bf16.msra.mxu0 %v1467
        %2226 = vmatpush.bf16.msra.mxu0 %v1461
        %2227 = vmatpush.bf16.msra.mxu0 %v1455
        %2228 = vmatpush.bf16.msra.mxu0 %v1449
        %2229 = vmatmul.bf16.gmra.mxu0 %v227
        %v2230 = vpop.f32.mrf.mxu0
        %v2231 = vadd.f32 %v2218, %v2230
        %v2232 = vpop.f32.mrf.mxu0
        %2233 = vdwg.mxu0
        %2234 = vmatpush.bf16.msra.mxu0 %v1539
        %2235 = vmatpush.bf16.msra.mxu0 %v1533
        %2236 = vmatpush.bf16.msra.mxu0 %v1527
        %2237 = vmatpush.bf16.msra.mxu0 %v1521
        %2238 = vmatpush.bf16.msra.mxu0 %v1515
        %2239 = vmatpush.bf16.msra.mxu0 %v1509
        %2240 = vmatpush.bf16.msra.mxu0 %v1503
        %2241 = vmatpush.bf16.msra.mxu0 %v1497
        %2242 = vmatmul.bf16.gmra.mxu0 %v228
        %v2243 = vpop.f32.mrf.mxu0
        %v2244 = vadd.f32 %v2231, %v2243
        %v2245 = vpop.f32.mrf.mxu0
        %2246 = vdwg.mxu0
        %2247 = vmatpush.bf16.msra.mxu0 %v1587
        %2248 = vmatpush.bf16.msra.mxu0 %v1581
        %2249 = vmatpush.bf16.msra.mxu0 %v1575
        %2250 = vmatpush.bf16.msra.mxu0 %v1569
        %2251 = vmatpush.bf16.msra.mxu0 %v1563
        %2252 = vmatpush.bf16.msra.mxu0 %v1557
        %2253 = vmatpush.bf16.msra.mxu0 %v1551
        %2254 = vmatpush.bf16.msra.mxu0 %v1545
        %2255 = vmatmul.bf16.gmra.mxu0 %v229
        %v2256 = vpop.f32.mrf.mxu0
        %v2257 = vadd.f32 %v2244, %v2256
        %v2258 = vpop.f32.mrf.mxu0
        %2259 = vdwg.mxu0
        %2260 = vmatpush.bf16.msra.mxu0 %v1635
        %2261 = vmatpush.bf16.msra.mxu0 %v1629
        %2262 = vmatpush.bf16.msra.mxu0 %v1623
        %2263 = vmatpush.bf16.msra.mxu0 %v1617
        %2264 = vmatpush.bf16.msra.mxu0 %v1611
        %2265 = vmatpush.bf16.msra.mxu0 %v1605
        %2266 = vmatpush.bf16.msra.mxu0 %v1599
        %2267 = vmatpush.bf16.msra.mxu0 %v1593
        %2268 = vmatmul.bf16.gmra.mxu0 %v230
        %v2269 = vpop.f32.mrf.mxu0
        %v2270 = vadd.f32 %v2257, %v2269
        %v2271 = vpop.f32.mrf.mxu0
        %2272 = vdwg.mxu0
        %2273 = vmatpush.bf16.msra.mxu0 %v1683
        %2274 = vmatpush.bf16.msra.mxu0 %v1677
        %2275 = vmatpush.bf16.msra.mxu0 %v1671
        %2276 = vmatpush.bf16.msra.mxu0 %v1665
        %2277 = vmatpush.bf16.msra.mxu0 %v1659
        %2278 = vmatpush.bf16.msra.mxu0 %v1653
        %2279 = vmatpush.bf16.msra.mxu0 %v1647
        %2280 = vmatpush.bf16.msra.mxu0 %v1641
        %2281 = vmatmul.bf16.gmra.mxu0 %v231
        %v2282 = vpop.f32.mrf.mxu0
        %v2283 = vadd.f32 %v2270, %v2282
        %v2284 = vpop.f32.mrf.mxu0
        %2285 = vdwg.mxu0
        %2286 = vmatpush.bf16.msra.mxu0 %v1444
        %2287 = vmatpush.bf16.msra.mxu0 %v1438
        %2288 = vmatpush.bf16.msra.mxu0 %v1432
        %2289 = vmatpush.bf16.msra.mxu0 %v1426
        %2290 = vmatpush.bf16.msra.mxu0 %v1420
        %2291 = vmatpush.bf16.msra.mxu0 %v1414
        %2292 = vmatpush.bf16.msra.mxu0 %v1408
        %2293 = vmatpush.bf16.msra.mxu0 %v1402
        %2294 = vmatmul.bf16.gmra.mxu0 %v226
        %v2295 = vpop.f32.mrf.mxu0
        %v2296 = vadd.f32 %v526, %v2295
        %v2297 = vpop.f32.mrf.mxu0
        %2298 = vdwg.mxu0
        %2299 = vmatpush.bf16.msra.mxu0 %v1492
        %2300 = vmatpush.bf16.msra.mxu0 %v1486
        %2301 = vmatpush.bf16.msra.mxu0 %v1480
        %2302 = vmatpush.bf16.msra.mxu0 %v1474
        %2303 = vmatpush.bf16.msra.mxu0 %v1468
        %2304 = vmatpush.bf16.msra.mxu0 %v1462
        %2305 = vmatpush.bf16.msra.mxu0 %v1456
        %2306 = vmatpush.bf16.msra.mxu0 %v1450
        %2307 = vmatmul.bf16.gmra.mxu0 %v227
        %v2308 = vpop.f32.mrf.mxu0
        %v2309 = vadd.f32 %v2296, %v2308
        %v2310 = vpop.f32.mrf.mxu0
        %2311 = vdwg.mxu0
        %2312 = vmatpush.bf16.msra.mxu0 %v1540
        %2313 = vmatpush.bf16.msra.mxu0 %v1534
        %2314 = vmatpush.bf16.msra.mxu0 %v1528
        %2315 = vmatpush.bf16.msra.mxu0 %v1522
        %2316 = vmatpush.bf16.msra.mxu0 %v1516
        %2317 = vmatpush.bf16.msra.mxu0 %v1510
        %2318 = vmatpush.bf16.msra.mxu0 %v1504
        %2319 = vmatpush.bf16.msra.mxu0 %v1498
        %2320 = vmatmul.bf16.gmra.mxu0 %v228
        %v2321 = vpop.f32.mrf.mxu0
        %v2322 = vadd.f32 %v2309, %v2321
        %v2323 = vpop.f32.mrf.mxu0
        %2324 = vdwg.mxu0
        %2325 = vmatpush.bf16.msra.mxu0 %v1588
        %2326 = vmatpush.bf16.msra.mxu0 %v1582
        %2327 = vmatpush.bf16.msra.mxu0 %v1576
        %2328 = vmatpush.bf16.msra.mxu0 %v1570
        %2329 = vmatpush.bf16.msra.mxu0 %v1564
        %2330 = vmatpush.bf16.msra.mxu0 %v1558
        %2331 = vmatpush.bf16.msra.mxu0 %v1552
        %2332 = vmatpush.bf16.msra.mxu0 %v1546
        %2333 = vmatmul.bf16.gmra.mxu0 %v229
        %v2334 = vpop.f32.mrf.mxu0
        %v2335 = vadd.f32 %v2322, %v2334
        %v2336 = vpop.f32.mrf.mxu0
        %2337 = vdwg.mxu0
        %2338 = vmatpush.bf16.msra.mxu0 %v1636
        %2339 = vmatpush.bf16.msra.mxu0 %v1630
        %2340 = vmatpush.bf16.msra.mxu0 %v1624
        %2341 = vmatpush.bf16.msra.mxu0 %v1618
        %2342 = vmatpush.bf16.msra.mxu0 %v1612
        %2343 = vmatpush.bf16.msra.mxu0 %v1606
        %2344 = vmatpush.bf16.msra.mxu0 %v1600
        %2345 = vmatpush.bf16.msra.mxu0 %v1594
        %2346 = vmatmul.bf16.gmra.mxu0 %v230
        %v2347 = vpop.f32.mrf.mxu0
        %v2348 = vadd.f32 %v2335, %v2347
        %v2349 = vpop.f32.mrf.mxu0
        %2350 = vdwg.mxu0
        %2351 = vmatpush.bf16.msra.mxu0 %v1684
        %2352 = vmatpush.bf16.msra.mxu0 %v1678
        %2353 = vmatpush.bf16.msra.mxu0 %v1672
        %2354 = vmatpush.bf16.msra.mxu0 %v1666
        %2355 = vmatpush.bf16.msra.mxu0 %v1660
        %2356 = vmatpush.bf16.msra.mxu0 %v1654
        %2357 = vmatpush.bf16.msra.mxu0 %v1648
        %2358 = vmatpush.bf16.msra.mxu0 %v1642
        %2359 = vmatmul.bf16.gmra.mxu0 %v231
        %v2360 = vpop.f32.mrf.mxu0
        %v2361 = vadd.f32 %v2348, %v2360
        %v2362 = vpop.f32.mrf.mxu0
        %2363 = vdwg.mxu0
        %2364 = vmatpush.bf16.msra.mxu0 %v1445
        %2365 = vmatpush.bf16.msra.mxu0 %v1439
        %2366 = vmatpush.bf16.msra.mxu0 %v1433
        %2367 = vmatpush.bf16.msra.mxu0 %v1427
        %2368 = vmatpush.bf16.msra.mxu0 %v1421
        %2369 = vmatpush.bf16.msra.mxu0 %v1415
        %2370 = vmatpush.bf16.msra.mxu0 %v1409
        %2371 = vmatpush.bf16.msra.mxu0 %v1403
        %2372 = vmatmul.bf16.gmra.mxu0 %v226
        %v2373 = vpop.f32.mrf.mxu0
        %v2374 = vadd.f32 %v527, %v2373
        %v2375 = vpop.f32.mrf.mxu0
        %2376 = vdwg.mxu0
        %2377 = vmatpush.bf16.msra.mxu0 %v1493
        %2378 = vmatpush.bf16.msra.mxu0 %v1487
        %2379 = vmatpush.bf16.msra.mxu0 %v1481
        %2380 = vmatpush.bf16.msra.mxu0 %v1475
        %2381 = vmatpush.bf16.msra.mxu0 %v1469
        %2382 = vmatpush.bf16.msra.mxu0 %v1463
        %2383 = vmatpush.bf16.msra.mxu0 %v1457
        %2384 = vmatpush.bf16.msra.mxu0 %v1451
        %2385 = vmatmul.bf16.gmra.mxu0 %v227
        %v2386 = vpop.f32.mrf.mxu0
        %v2387 = vadd.f32 %v2374, %v2386
        %v2388 = vpop.f32.mrf.mxu0
        %2389 = vdwg.mxu0
        %2390 = vmatpush.bf16.msra.mxu0 %v1541
        %2391 = vmatpush.bf16.msra.mxu0 %v1535
        %2392 = vmatpush.bf16.msra.mxu0 %v1529
        %2393 = vmatpush.bf16.msra.mxu0 %v1523
        %2394 = vmatpush.bf16.msra.mxu0 %v1517
        %2395 = vmatpush.bf16.msra.mxu0 %v1511
        %2396 = vmatpush.bf16.msra.mxu0 %v1505
        %2397 = vmatpush.bf16.msra.mxu0 %v1499
        %2398 = vmatmul.bf16.gmra.mxu0 %v228
        %v2399 = vpop.f32.mrf.mxu0
        %v2400 = vadd.f32 %v2387, %v2399
        %v2401 = vpop.f32.mrf.mxu0
        %2402 = vdwg.mxu0
        %2403 = vmatpush.bf16.msra.mxu0 %v1589
        %2404 = vmatpush.bf16.msra.mxu0 %v1583
        %2405 = vmatpush.bf16.msra.mxu0 %v1577
        %2406 = vmatpush.bf16.msra.mxu0 %v1571
        %2407 = vmatpush.bf16.msra.mxu0 %v1565
        %2408 = vmatpush.bf16.msra.mxu0 %v1559
        %2409 = vmatpush.bf16.msra.mxu0 %v1553
        %2410 = vmatpush.bf16.msra.mxu0 %v1547
        %2411 = vmatmul.bf16.gmra.mxu0 %v229
        %v2412 = vpop.f32.mrf.mxu0
        %v2413 = vadd.f32 %v2400, %v2412
        %v2414 = vpop.f32.mrf.mxu0
        %2415 = vdwg.mxu0
        %2416 = vmatpush.bf16.msra.mxu0 %v1637
        %2417 = vmatpush.bf16.msra.mxu0 %v1631
        %2418 = vmatpush.bf16.msra.mxu0 %v1625
        %2419 = vmatpush.bf16.msra.mxu0 %v1619
        %2420 = vmatpush.bf16.msra.mxu0 %v1613
        %2421 = vmatpush.bf16.msra.mxu0 %v1607
        %2422 = vmatpush.bf16.msra.mxu0 %v1601
        %2423 = vmatpush.bf16.msra.mxu0 %v1595
        %2424 = vmatmul.bf16.gmra.mxu0 %v230
        %v2425 = vpop.f32.mrf.mxu0
        %v2426 = vadd.f32 %v2413, %v2425
        %v2427 = vpop.f32.mrf.mxu0
        %2428 = vdwg.mxu0
        %2429 = vmatpush.bf16.msra.mxu0 %v1685
        %2430 = vmatpush.bf16.msra.mxu0 %v1679
        %2431 = vmatpush.bf16.msra.mxu0 %v1673
        %2432 = vmatpush.bf16.msra.mxu0 %v1667
        %2433 = vmatpush.bf16.msra.mxu0 %v1661
        %2434 = vmatpush.bf16.msra.mxu0 %v1655
        %2435 = vmatpush.bf16.msra.mxu0 %v1649
        %2436 = vmatpush.bf16.msra.mxu0 %v1643
        %2437 = vmatmul.bf16.gmra.mxu0 %v231
        %v2438 = vpop.f32.mrf.mxu0
        %v2439 = vadd.f32 %v2426, %v2438
        %v2440 = vpop.f32.mrf.mxu0
        %2441 = vdwg.mxu0
        %v2442 = vadd.f32 %v2049, %v220
        %v2443 = vadd.f32 %v2127, %v221
        %v2444 = vadd.f32 %v2205, %v222
        %v2445 = vadd.f32 %v2283, %v223
        %v2446 = vadd.f32 %v2361, %v224
        %v2447 = vadd.f32 %v2439, %v225
        %v2448 = vmul.f32 %v2442, %v2442
        %v2449 = vmul.f32 %v2443, %v2443
        %v2450 = vmul.f32 %v2444, %v2444
        %v2451 = vmul.f32 %v2445, %v2445
        %v2452 = vmul.f32 %v2446, %v2446
        %v2453 = vmul.f32 %v2447, %v2447
        %v2454 = vadd.f32 %v2448, %v2449
        %v2455 = vadd.f32 %v2454, %v2450
        %v2456 = vadd.f32 %v2455, %v2451
        %v2457 = vadd.f32 %v2456, %v2452
        %v2458 = vadd.f32 %v2457, %v2453
        %2459 = vadd.xlane.f32.xlu0 %v2458
        %v2460 = vpop.xlane.xlu0 %2459
        %v2461 = vmax.f32 %v2460, 1e-24
        %v2462 = vrsqrt.pop %v2461
        %v2463 = vmul.f32 %v2462, %v2461
        %v2464 = vmul.f32 %v2463, %v2462
        %v2465 = vmul.f32 0.5, %v2464
        %v2466 = vsub.f32 1.5, %v2465
        %v2467 = vmul.f32 %v2462, %v2466
        %vm2468 = vweird.f32 %v2461
        %vm2469 = vweird.f32 %v2462
        %vm2470 = vmor %vm2468, %vm2469
        %v2471 = vsel %vm2470, %v2462, %v2467
        %v2472 = vmul.f32 %v2442, %v2471
        %v2473 = vmul.f32 %v2443, %v2471
        %v2474 = vmul.f32 %v2444, %v2471
        %v2475 = vmul.f32 %v2445, %v2471
        %v2476 = vmul.f32 %v2446, %v2471
        %v2477 = vmul.f32 %v2447, %v2471
        %2478 = vst [vmem:[%s219] sm:$0xff] %v2472
        %2479 = vst [vmem:[%s219 + $0x8] sm:$0xff] %v2473
        %2480 = vst [vmem:[%s219 + $0x10] sm:$0xff] %v2474
        %2481 = vst [vmem:[%s219 + $0x18] sm:$0xff] %v2475
        %2482 = vst [vmem:[%s219 + $0x20] sm:$0xff] %v2476
        %2483 = vst [vmem:[%s219 + $0x28] sm:$0xff] %v2477
        %s2484 = sand.u32 %s97, 1
        %s2485 = scalar_lea.sflag [#allocation4], %s2484
        %s2486 = sand.u32 %s97, 1
        %s2487 = smul.addr %s2486, 48
        %s2488 = scalar_lea.vmem [#allocation8], %s2487
        // Predicated region
        $region45: #{tpu_custom_call.1} parent=31 // pred_check
          %p2489 = pneg %p107
        $region46: #{tpu_custom_call.1} parent=31 // pred_check_branch
          %2491 = sbr.rel (%p2489) target = $region48
        $region47: #{tpu_custom_call.1} parent=31 // pred_region
          %2493 = vsyncadd %s2485, 0
          %s2494 = smul.addr %s21, 6
          %s2495 = smul.addr %s2494, 8
          %s2496 = scalar_lea.hbm %s3, %s2495
          %s2498 = sshll.u32 %s2488, 4
          %s2499 = int_to_ptr.vmem [resolvable:$true] %s2498
          %s2500 = sshll.u32 %s2496, 4
          %s2501 = int_to_ptr.hbm [resolvable:$true] %s2500
          %2503 = dma.vmem_to_hbm [thread:$0]  %s2499, 768, %s2501, %s2485
        $region48: #{tpu_custom_call.1} parent=31 // pred_fallthru
          _
      $region32: #{tpu_custom_call.1} parent=5 // pred_fallthru
        _
      %p2504 = scmp.le.s32.totalorder 2, %s16
      // Predicated region
      $region49: #{tpu_custom_call.1} parent=5 // pred_check
        %p2505 = pneg %p2504
      $region50: #{tpu_custom_call.1} parent=5 // pred_check_branch
        %2507 = sbr.rel (%p2505) target = $region52
      $region51: #{tpu_custom_call.1} parent=5 // pred_region
        %s2508 = ssub.s32 %s16, 2
        // Predicated region
        $region53: #{tpu_custom_call.1} parent=51 // pred_check
          %p2509 = pneg %p113
        $region54: #{tpu_custom_call.1} parent=51 // pred_check_branch
          %2511 = sbr.rel (%p2509) target = $region56
        $region55: #{tpu_custom_call.1} parent=51 // pred_region
          %s2512 = sand.u32 %s98, 1
          %s2513 = scalar_lea.sflag [#allocation4], %s2512
          %s2514 = sand.u32 %s98, 1
          %s2515 = smul.addr %s2514, 48
          %s2516 = scalar_lea.vmem [#allocation8], %s2515
          %2518 = dma.done %s2513, 768
        $region56: #{tpu_custom_call.1} parent=51 // pred_fallthru
          _
      $region52: #{tpu_custom_call.1} parent=5 // pred_fallthru
        _
    $region6: #{tpu_custom_call.1} parent=1 // loop_footer
      %s20 = sadd.s32 1, %s16
    $region7: #{tpu_custom_call.1} parent=1 // loop_footer_branch
      %15 = sbr.rel target = $region3
    $region8: #{tpu_custom_call.1} parent=1 // loop_exit
      _
    %2519 = vsyncpa [#allocation3], 1
    %s2520 = scalar_lea.sflag [#allocation3], 1
    %2521 = vsyncpa %s2520, 1
    %2522 = vsyncpa [#allocation6], 1
    %2523 = vsyncpa [#allocation4], 1
    %s2524 = scalar_lea.sflag [#allocation4], 1
    %2525 = vsyncpa %s2524, 1

</llo_original>
